<compile_context>
chip_gen: v7x
topology: tpu7x:2x2x1
jax: 0.10.0
libtpu: 0.0.40
codegen_flags: <defaults>
</compile_context>

<pallas_src>
import functools

import jax
import jax.numpy as jnp
from jax import lax
from jax.experimental import pallas as pl
from jax.experimental.pallas import tpu as pltpu


def _round_up(v, m):
    return ((v + m - 1) // m) * m


def _gru_kernel(seq_ref, gx_ref, whh_ref, bhh_ref, hs_ref, hn_ref, h_state,
                *, time_chunk, hp):
    """One grid step == `time_chunk` timesteps. Hidden state lives in VMEM scratch.

    seq_ref: (Bp, 1) int32        valid lengths (padded rows have 0)
    gx_ref : (TC, Bp, 3*Hp) f32   precomputed x @ W_ih + b_ih, gate order [r|z|n]
    whh_ref: (Hp, 3*Hp) f32       fused hidden-to-hidden weights
    bhh_ref: (1, 3*Hp) f32
    hs_ref : (TC, Bp, Hp)         per-timestep outputs (0 at padded positions)
    hn_ref : (Bp, Hp)             final hidden state (written on last grid step only)
    h_state: (Bp, Hp) f32         recurrent carry across grid steps
    """
    c = pl.program_id(0)

    @pl.when(c == 0)
    def _():
        h_state[...] = jnp.zeros_like(h_state)

    seq = seq_ref[...]                       # (Bp, 1) int32
    whh = whh_ref[...]                       # (Hp, 3Hp)
    bhh = bhh_ref[...]                       # (1, 3Hp)
    t0 = c * time_chunk

    h = h_state[...]                         # (Bp, Hp) f32, carried in vregs
    for i in range(time_chunk):              # statically unrolled inner loop
        gx = gx_ref[i]                       # (Bp, 3Hp) input pre-activations
        gh = jnp.dot(h, whh, preferred_element_type=jnp.float32) + bhh  # (Bp, 3Hp)
        r = jax.nn.sigmoid(gx[:, 0:hp] + gh[:, 0:hp])
        z = jax.nn.sigmoid(gx[:, hp:2 * hp] + gh[:, hp:2 * hp])
        n = jnp.tanh(gx[:, 2 * hp:3 * hp] + r * gh[:, 2 * hp:3 * hp])
        h_new = (1.0 - z) * n + z * h        # (Bp, Hp)

        # Packed-sequence semantics: freeze h past seq_len[b]; padded hs positions are 0.
        valid = (t0 + i) < seq               # (Bp, 1) bool
        h = jnp.where(valid, h_new, h)
        hs_ref[i] = jnp.where(valid, h_new, 0.0).astype(hs_ref.dtype)

    h_state[...] = h

    @pl.when(c == pl.num_programs(0) - 1)
    def _():
        hn_ref[...] = h_state[...].astype(hn_ref.dtype)


def gru_forward(x, seq_len, w_ih, w_hh, b_ih, b_hh, *, time_chunk=8):
    """x: (B, T, I) float32 batch_first. seq_len: (B,) int32.
    w_ih: (3, I, H), w_hh: (3, H, H), b_ih/b_hh: (3, 1, H), gate order [r, z, n].
    Returns (hs (B, T, H), h_n (B, H))."""
    B, T, I = x.shape
    H = w_hh.shape[-1]

    Bp = _round_up(B, 8)        # sublane density
    Hp = _round_up(H, 128)      # lane density
    TC = max(1, min(time_chunk, T))
    Tp = _round_up(T, TC)

    # Fused weights with per-gate zero-padding of the gate (output) dim to Hp.
    # Zero columns/rows keep padded hidden lanes exactly 0 through the recurrence.
    def pad_gate_cols(w):                     # (3, R, H) -> (R, 3*Hp)
        w = jnp.pad(w, ((0, 0), (0, 0), (0, Hp - H)))
        return jnp.concatenate([w[0], w[1], w[2]], axis=-1)

    w_ih_f = pad_gate_cols(w_ih)                                   # (I, 3Hp)
    b_ih_f = pad_gate_cols(b_ih)                                   # (1, 3Hp)
    w_hh_f = jnp.pad(pad_gate_cols(w_hh), ((0, Hp - H), (0, 0)))   # (Hp, 3Hp)
    b_hh_f = pad_gate_cols(b_hh)                                   # (1, 3Hp)

    # Hoist the input projection: one MXU-saturating (B*T, I) x (I, 3Hp) matmul via XLA.
    gx = jnp.einsum('bti,ig->btg', x.astype(jnp.float32), w_ih_f) + b_ih_f  # (B, T, 3Hp)
    gx = jnp.pad(gx, ((0, Bp - B), (0, Tp - T), (0, 0)))
    gx = jnp.swapaxes(gx, 0, 1)                                    # (Tp, Bp, 3Hp) time-major

    seq2d = jnp.pad(seq_len.astype(jnp.int32), (0, Bp - B)).reshape(Bp, 1)

    n_chunks = Tp // TC
    kernel = functools.partial(_gru_kernel, time_chunk=TC, hp=Hp)

    grid_spec = pltpu.PrefetchScalarGridSpec(
        num_scalar_prefetch=0,
        grid=(n_chunks,),
        in_specs=[
            pl.BlockSpec((Bp, 1), lambda c: (0, 0)),               # seq_len
            pl.BlockSpec((TC, Bp, 3 * Hp), lambda c: (c, 0, 0)),   # gate_x chunk
            pl.BlockSpec((Hp, 3 * Hp), lambda c: (0, 0)),          # w_hh (fused)
            pl.BlockSpec((1, 3 * Hp), lambda c: (0, 0)),           # b_hh (fused)
        ],
        out_specs=[
            pl.BlockSpec((TC, Bp, Hp), lambda c: (c, 0, 0)),       # hs chunk (time-major)
            pl.BlockSpec((Bp, Hp), lambda c: (0, 0)),              # h_n (resident)
        ],
        scratch_shapes=[pltpu.VMEM((Bp, Hp), jnp.float32)],
    )

    hs_tm, h_n = pl.pallas_call(
        kernel,
        grid_spec=grid_spec,
        out_shape=(
            jax.ShapeDtypeStruct((Tp, Bp, Hp), x.dtype),
            jax.ShapeDtypeStruct((Bp, Hp), x.dtype),
        ),
        compiler_params=pltpu.CompilerParams(
            dimension_semantics=("arbitrary",),  # sequential recurrence over time chunks
        ),
    )(seq2d, gx, w_hh_f, b_hh_f)

    hs = jnp.swapaxes(hs_tm[:T, :B, :H], 0, 1)   # back to batch_first, drop padding
    return hs, h_n[:B, :H]


def gru_reference(x, seq_len, w_ih, w_hh, b_ih, b_hh):
    """Pure-JAX reference (lax.scan) with the same packed-sequence semantics."""
    B, T, I = x.shape

    def step(h, inp):
        xt, t = inp
        r = jax.nn.sigmoid(xt @ w_ih[0] + b_ih[0] + h @ w_hh[0] + b_hh[0])
        z = jax.nn.sigmoid(xt @ w_ih[1] + b_ih[1] + h @ w_hh[1] + b_hh[1])
        n = jnp.tanh(xt @ w_ih[2] + b_ih[2] + r * (h @ w_hh[2] + b_hh[2]))
        h_new = (1.0 - z) * n + z * h
        valid = (t < seq_len)[:, None].astype(x.dtype)
        h_upd = valid * h_new + (1.0 - valid) * h
        return h_upd, valid * h_new

    h0 = jnp.zeros((B, w_hh.shape[-1]), x.dtype)
    h_n, hs_tm = lax.scan(step, h0, (jnp.swapaxes(x, 0, 1), jnp.arange(T)))
    return jnp.swapaxes(hs_tm, 0, 1), h_n


def init_gru_params(key, input_dim, hidden_dim):
    """Deterministic synthetic init mirroring nn.GRU shapes: U(-1/sqrt(H), 1/sqrt(H)).

    torch: weight_ih_l0 (3H, I), weight_hh_l0 (3H, H), bias_ih_l0 (3H,), bias_hh_l0 (3H,)
    here:  per-gate, transposed for right-multiplication: (3, I, H), (3, H, H), (3, 1, H), (3, 1, H)
    """
    k = 1.0 / jnp.sqrt(jnp.float32(hidden_dim))
    k1, k2, k3, k4 = jax.random.split(key, 4)
    w_ih = jax.random.uniform(k1, (3, input_dim, hidden_dim), jnp.float32, -k, k)
    w_hh = jax.random.uniform(k2, (3, hidden_dim, hidden_dim), jnp.float32, -k, k)
    b_ih = jax.random.uniform(k3, (3, 1, hidden_dim), jnp.float32, -k, k)
    b_hh = jax.random.uniform(k4, (3, 1, hidden_dim), jnp.float32, -k, k)
    return w_ih, w_hh, b_ih, b_hh


if __name__ == "__main__":
    # TODO(synk): bidirectional / multi-layer GRU variants not implemented (module defaults
    # are unidirectional, single layer); would require a second reversed-time kernel pass.
    B, T, I, H = 2, 8, 32, 32
    key = jax.random.PRNGKey(0)
    kx, kp = jax.random.split(key)

    x = jax.random.normal(kx, (B, T, I), jnp.float32)
    # max(seq_len) == T so pad_packed_sequence output length equals T (as in the torch module).
    seq_len = jnp.array([T, 5], jnp.int32)
    w_ih, w_hh, b_ih, b_hh = init_gru_params(kp, I, H)

    # time_chunk=4 -> grid=(2,) so the recurrent carry / final-write gating cross grid steps.
    hs, h_n = gru_forward(x, seq_len, w_ih, w_hh, b_ih, b_hh, time_chunk=4)
    jax.block_until_ready((hs, h_n))

    hs_ref, h_n_ref = gru_reference(x, seq_len, w_ih, w_hh, b_ih, b_hh)
    assert hs.shape == (B, T, H) and h_n.shape == (B, H)
    assert jnp.allclose(hs, hs_ref, atol=1e-3, rtol=1e-3)
    assert jnp.allclose(h_n, h_n_ref, atol=1e-3, rtol=1e-3)
    # padded positions must be exactly zero, h_n must equal the last valid hs row
    assert jnp.all(hs[1, 5:, :] == 0.0)
    assert jnp.allclose(h_n[1], hs[1, 4], atol=1e-6)

    print("KERNEL_OK")
</pallas_src>

<mosaic_0001>
module attributes {stable_mosaic.version = 11 : i64} {
  func.func @_gru_kernel(%arg0: i32, %arg1: memref<8x1xi32, #tpu.memory_space<vmem>>, %arg2: memref<4x8x384xf32, #tpu.memory_space<vmem>>, %arg3: memref<128x384xf32, #tpu.memory_space<vmem>>, %arg4: memref<1x384xf32, #tpu.memory_space<vmem>>, %arg5: memref<4x8x128xf32, #tpu.memory_space<vmem>>, %arg6: memref<8x128xf32, #tpu.memory_space<vmem>>, %arg7: memref<8x128xf32, #tpu.memory_space<vmem>>) attributes {dimension_semantics = [#tpu.dimension_semantics<arbitrary>], iteration_bounds = array<i64: 2>, scalar_prefetch = 0 : i64, scratch_operands = 1 : i64, tpu.core_type = #tpu.core_type<tc>, window_params = [{pipeline_mode = #tpu.pipeline_mode<synchronous>, transform_indices = @transform_0, window_bounds = array<i64: 8, 1>}, {transform_indices = @transform_1, window_bounds = array<i64: 4, 8, 384>}, {pipeline_mode = #tpu.pipeline_mode<synchronous>, transform_indices = @transform_2, window_bounds = array<i64: 128, 384>}, {pipeline_mode = #tpu.pipeline_mode<synchronous>, transform_indices = @transform_3, window_bounds = array<i64: 1, 384>}, {transform_indices = @transform_4, window_bounds = array<i64: 4, 8, 128>}, {pipeline_mode = #tpu.pipeline_mode<synchronous>, transform_indices = @transform_5, window_bounds = array<i64: 8, 128>}]} {
    %c0_i32 = arith.constant 0 : i32
    %0 = arith.cmpi eq, %arg0, %c0_i32 : i32
    %1 = arith.extui %0 : i1 to i32
    %c0_i32_0 = arith.constant 0 : i32
    %2 = arith.cmpi ne, %1, %c0_i32_0 : i32
    scf.if %2 {
      %cst_53 = arith.constant 0.000000e+00 : f32
      %188 = vector.broadcast %cst_53 : f32 to vector<8x128xf32>
      %c0_54 = arith.constant 0 : index
      %c0_55 = arith.constant 0 : index
      %189 = vector.load %arg7[%c0_54, %c0_55] : memref<8x128xf32, #tpu.memory_space<vmem>>, vector<8x128xf32>
      tpu.vector_store %arg7[%c0_54, %c0_55], %188 {strides = array<i32>} : memref<8x128xf32, #tpu.memory_space<vmem>>, vector<8x128xf32>,
    } else {
    }
    %c0 = arith.constant 0 : index
    %c0_1 = arith.constant 0 : index
    %3 = vector.load %arg1[%c0, %c0_1] : memref<8x1xi32, #tpu.memory_space<vmem>>, vector<8x1xi32>
    %c0_2 = arith.constant 0 : index
    %c0_3 = arith.constant 0 : index
    %4 = vector.load %arg3[%c0_2, %c0_3] : memref<128x384xf32, #tpu.memory_space<vmem>>, vector<128x384xf32>
    %c0_4 = arith.constant 0 : index
    %c0_5 = arith.constant 0 : index
    %5 = vector.load %arg4[%c0_4, %c0_5] : memref<1x384xf32, #tpu.memory_space<vmem>>, vector<1x384xf32>
    %c4_i32 = arith.constant 4 : i32
    %6 = arith.muli %arg0, %c4_i32 : i32
    %c0_6 = arith.constant 0 : index
    %c0_7 = arith.constant 0 : index
    %7 = vector.load %arg7[%c0_6, %c0_7] : memref<8x128xf32, #tpu.memory_space<vmem>>, vector<8x128xf32>
    %c0_8 = arith.constant 0 : index
    %c0_9 = arith.constant 0 : index
    %c0_10 = arith.constant 0 : index
    %8 = vector.load %arg2[%c0_8, %c0_9, %c0_10] : memref<4x8x384xf32, #tpu.memory_space<vmem>>, vector<1x8x384xf32>
    %9 = vector.shape_cast %8 : vector<1x8x384xf32> to vector<8x384xf32>
    %cst = arith.constant dense<0.000000e+00> : vector<8x384xf32>
    %10 = tpu.matmul %7, %4, %cst {dimension_numbers = #tpu.dot_dimension_numbers<[1], [0], [0], [1], [0, 0, 1, 1], [], []>} : vector<8x128xf32>, vector<128x384xf32>, vector<8x384xf32> -> vector<8x384xf32>
    %11 = vector.broadcast %5 : vector<1x384xf32> to vector<8x384xf32>
    %12 = arith.addf %10, %11 : vector<8x384xf32>
    %13 = vector.extract_strided_slice %9 {offsets = [0, 0], sizes = [8, 128], strides = [1, 1]} : vector<8x384xf32> to vector<8x128xf32>
    %14 = vector.extract_strided_slice %12 {offsets = [0, 0], sizes = [8, 128], strides = [1, 1]} : vector<8x384xf32> to vector<8x128xf32>
    %15 = arith.addf %13, %14 : vector<8x128xf32>
    %16 = arith.negf %15 : vector<8x128xf32>
    %17 = math.exp %16 : vector<8x128xf32>
    %cst_11 = arith.constant 1.000000e+00 : f32
    %18 = vector.broadcast %cst_11 : f32 to vector<8x128xf32>
    %19 = arith.addf %18, %17 : vector<8x128xf32>
    %20 = arith.divf %18, %19 : vector<8x128xf32>
    %21 = vector.extract_strided_slice %9 {offsets = [0, 128], sizes = [8, 128], strides = [1, 1]} : vector<8x384xf32> to vector<8x128xf32>
    %22 = vector.extract_strided_slice %12 {offsets = [0, 128], sizes = [8, 128], strides = [1, 1]} : vector<8x384xf32> to vector<8x128xf32>
    %23 = arith.addf %21, %22 : vector<8x128xf32>
    %24 = arith.negf %23 : vector<8x128xf32>
    %25 = math.exp %24 : vector<8x128xf32>
    %cst_12 = arith.constant 1.000000e+00 : f32
    %26 = vector.broadcast %cst_12 : f32 to vector<8x128xf32>
    %27 = arith.addf %26, %25 : vector<8x128xf32>
    %28 = arith.divf %26, %27 : vector<8x128xf32>
    %29 = vector.extract_strided_slice %9 {offsets = [0, 256], sizes = [8, 128], strides = [1, 1]} : vector<8x384xf32> to vector<8x128xf32>
    %30 = vector.extract_strided_slice %12 {offsets = [0, 256], sizes = [8, 128], strides = [1, 1]} : vector<8x384xf32> to vector<8x128xf32>
    %31 = arith.mulf %20, %30 : vector<8x128xf32>
    %32 = arith.addf %29, %31 : vector<8x128xf32>
    %33 = math.tanh %32 : vector<8x128xf32>
    %cst_13 = arith.constant 1.000000e+00 : f32
    %34 = vector.broadcast %cst_13 : f32 to vector<8x128xf32>
    %35 = arith.subf %34, %28 : vector<8x128xf32>
    %36 = arith.mulf %35, %33 : vector<8x128xf32>
    %37 = arith.mulf %28, %7 : vector<8x128xf32>
    %38 = arith.addf %36, %37 : vector<8x128xf32>
    %c0_i32_14 = arith.constant 0 : i32
    %39 = arith.addi %6, %c0_i32_14 : i32
    %40 = vector.broadcast %39 : i32 to vector<8x1xi32>
    %41 = arith.cmpi slt, %40, %3 : vector<8x1xi32>
    %42 = vector.shape_cast %41 : vector<8x1xi1> to vector<8x1xi1>
    %43 = vector.broadcast %42 : vector<8x1xi1> to vector<8x128xi1>
    %44 = arith.select %43, %38, %7 : vector<8x128xi1>, vector<8x128xf32>
    %cst_15 = arith.constant 0.000000e+00 : f32
    %45 = vector.shape_cast %41 : vector<8x1xi1> to vector<8x1xi1>
    %46 = vector.broadcast %45 : vector<8x1xi1> to vector<8x128xi1>
    %47 = vector.broadcast %cst_15 : f32 to vector<8x128xf32>
    %48 = arith.select %46, %38, %47 : vector<8x128xi1>, vector<8x128xf32>
    %c0_16 = arith.constant 0 : index
    %c0_17 = arith.constant 0 : index
    %c0_18 = arith.constant 0 : index
    %49 = vector.load %arg5[%c0_16, %c0_17, %c0_18] : memref<4x8x128xf32, #tpu.memory_space<vmem>>, vector<1x8x128xf32>
    %50 = vector.shape_cast %49 : vector<1x8x128xf32> to vector<8x128xf32>
    %51 = vector.shape_cast %48 : vector<8x128xf32> to vector<1x8x128xf32>
    tpu.vector_store %arg5[%c0_16, %c0_17, %c0_18], %51 {strides = array<i32>} : memref<4x8x128xf32, #tpu.memory_space<vmem>>, vector<1x8x128xf32>,
    %c1 = arith.constant 1 : index
    %c0_19 = arith.constant 0 : index
    %c0_20 = arith.constant 0 : index
    %52 = vector.load %arg2[%c1, %c0_19, %c0_20] : memref<4x8x384xf32, #tpu.memory_space<vmem>>, vector<1x8x384xf32>
    %53 = vector.shape_cast %52 : vector<1x8x384xf32> to vector<8x384xf32>
    %cst_21 = arith.constant dense<0.000000e+00> : vector<8x384xf32>
    %54 = tpu.matmul %44, %4, %cst_21 {dimension_numbers = #tpu.dot_dimension_numbers<[1], [0], [0], [1], [0, 0, 1, 1], [], []>} : vector<8x128xf32>, vector<128x384xf32>, vector<8x384xf32> -> vector<8x384xf32>
    %55 = vector.broadcast %5 : vector<1x384xf32> to vector<8x384xf32>
    %56 = arith.addf %54, %55 : vector<8x384xf32>
    %57 = vector.extract_strided_slice %53 {offsets = [0, 0], sizes = [8, 128], strides = [1, 1]} : vector<8x384xf32> to vector<8x128xf32>
    %58 = vector.extract_strided_slice %56 {offsets = [0, 0], sizes = [8, 128], strides = [1, 1]} : vector<8x384xf32> to vector<8x128xf32>
    %59 = arith.addf %57, %58 : vector<8x128xf32>
    %60 = arith.negf %59 : vector<8x128xf32>
    %61 = math.exp %60 : vector<8x128xf32>
    %cst_22 = arith.constant 1.000000e+00 : f32
    %62 = vector.broadcast %cst_22 : f32 to vector<8x128xf32>
    %63 = arith.addf %62, %61 : vector<8x128xf32>
    %64 = arith.divf %62, %63 : vector<8x128xf32>
    %65 = vector.extract_strided_slice %53 {offsets = [0, 128], sizes = [8, 128], strides = [1, 1]} : vector<8x384xf32> to vector<8x128xf32>
    %66 = vector.extract_strided_slice %56 {offsets = [0, 128], sizes = [8, 128], strides = [1, 1]} : vector<8x384xf32> to vector<8x128xf32>
    %67 = arith.addf %65, %66 : vector<8x128xf32>
    %68 = arith.negf %67 : vector<8x128xf32>
    %69 = math.exp %68 : vector<8x128xf32>
    %cst_23 = arith.constant 1.000000e+00 : f32
    %70 = vector.broadcast %cst_23 : f32 to vector<8x128xf32>
    %71 = arith.addf %70, %69 : vector<8x128xf32>
    %72 = arith.divf %70, %71 : vector<8x128xf32>
    %73 = vector.extract_strided_slice %53 {offsets = [0, 256], sizes = [8, 128], strides = [1, 1]} : vector<8x384xf32> to vector<8x128xf32>
    %74 = vector.extract_strided_slice %56 {offsets = [0, 256], sizes = [8, 128], strides = [1, 1]} : vector<8x384xf32> to vector<8x128xf32>
    %75 = arith.mulf %64, %74 : vector<8x128xf32>
    %76 = arith.addf %73, %75 : vector<8x128xf32>
    %77 = math.tanh %76 : vector<8x128xf32>
    %cst_24 = arith.constant 1.000000e+00 : f32
    %78 = vector.broadcast %cst_24 : f32 to vector<8x128xf32>
    %79 = arith.subf %78, %72 : vector<8x128xf32>
    %80 = arith.mulf %79, %77 : vector<8x128xf32>
    %81 = arith.mulf %72, %44 : vector<8x128xf32>
    %82 = arith.addf %80, %81 : vector<8x128xf32>
    %c1_i32 = arith.constant 1 : i32
    %83 = arith.addi %6, %c1_i32 : i32
    %84 = vector.broadcast %83 : i32 to vector<8x1xi32>
    %85 = arith.cmpi slt, %84, %3 : vector<8x1xi32>
    %86 = vector.shape_cast %85 : vector<8x1xi1> to vector<8x1xi1>
    %87 = vector.broadcast %86 : vector<8x1xi1> to vector<8x128xi1>
    %88 = arith.select %87, %82, %44 : vector<8x128xi1>, vector<8x128xf32>
    %cst_25 = arith.constant 0.000000e+00 : f32
    %89 = vector.shape_cast %85 : vector<8x1xi1> to vector<8x1xi1>
    %90 = vector.broadcast %89 : vector<8x1xi1> to vector<8x128xi1>
    %91 = vector.broadcast %cst_25 : f32 to vector<8x128xf32>
    %92 = arith.select %90, %82, %91 : vector<8x128xi1>, vector<8x128xf32>
    %c1_26 = arith.constant 1 : index
    %c0_27 = arith.constant 0 : index
    %c0_28 = arith.constant 0 : index
    %93 = vector.load %arg5[%c1_26, %c0_27, %c0_28] : memref<4x8x128xf32, #tpu.memory_space<vmem>>, vector<1x8x128xf32>
    %94 = vector.shape_cast %93 : vector<1x8x128xf32> to vector<8x128xf32>
    %95 = vector.shape_cast %92 : vector<8x128xf32> to vector<1x8x128xf32>
    tpu.vector_store %arg5[%c1_26, %c0_27, %c0_28], %95 {strides = array<i32>} : memref<4x8x128xf32, #tpu.memory_space<vmem>>, vector<1x8x128xf32>,
    %c2 = arith.constant 2 : index
    %c0_29 = arith.constant 0 : index
    %c0_30 = arith.constant 0 : index
    %96 = vector.load %arg2[%c2, %c0_29, %c0_30] : memref<4x8x384xf32, #tpu.memory_space<vmem>>, vector<1x8x384xf32>
    %97 = vector.shape_cast %96 : vector<1x8x384xf32> to vector<8x384xf32>
    %cst_31 = arith.constant dense<0.000000e+00> : vector<8x384xf32>
    %98 = tpu.matmul %88, %4, %cst_31 {dimension_numbers = #tpu.dot_dimension_numbers<[1], [0], [0], [1], [0, 0, 1, 1], [], []>} : vector<8x128xf32>, vector<128x384xf32>, vector<8x384xf32> -> vector<8x384xf32>
    %99 = vector.broadcast %5 : vector<1x384xf32> to vector<8x384xf32>
    %100 = arith.addf %98, %99 : vector<8x384xf32>
    %101 = vector.extract_strided_slice %97 {offsets = [0, 0], sizes = [8, 128], strides = [1, 1]} : vector<8x384xf32> to vector<8x128xf32>
    %102 = vector.extract_strided_slice %100 {offsets = [0, 0], sizes = [8, 128], strides = [1, 1]} : vector<8x384xf32> to vector<8x128xf32>
    %103 = arith.addf %101, %102 : vector<8x128xf32>
    %104 = arith.negf %103 : vector<8x128xf32>
    %105 = math.exp %104 : vector<8x128xf32>
    %cst_32 = arith.constant 1.000000e+00 : f32
    %106 = vector.broadcast %cst_32 : f32 to vector<8x128xf32>
    %107 = arith.addf %106, %105 : vector<8x128xf32>
    %108 = arith.divf %106, %107 : vector<8x128xf32>
    %109 = vector.extract_strided_slice %97 {offsets = [0, 128], sizes = [8, 128], strides = [1, 1]} : vector<8x384xf32> to vector<8x128xf32>
    %110 = vector.extract_strided_slice %100 {offsets = [0, 128], sizes = [8, 128], strides = [1, 1]} : vector<8x384xf32> to vector<8x128xf32>
    %111 = arith.addf %109, %110 : vector<8x128xf32>
    %112 = arith.negf %111 : vector<8x128xf32>
    %113 = math.exp %112 : vector<8x128xf32>
    %cst_33 = arith.constant 1.000000e+00 : f32
    %114 = vector.broadcast %cst_33 : f32 to vector<8x128xf32>
    %115 = arith.addf %114, %113 : vector<8x128xf32>
    %116 = arith.divf %114, %115 : vector<8x128xf32>
    %117 = vector.extract_strided_slice %97 {offsets = [0, 256], sizes = [8, 128], strides = [1, 1]} : vector<8x384xf32> to vector<8x128xf32>
    %118 = vector.extract_strided_slice %100 {offsets = [0, 256], sizes = [8, 128], strides = [1, 1]} : vector<8x384xf32> to vector<8x128xf32>
    %119 = arith.mulf %108, %118 : vector<8x128xf32>
    %120 = arith.addf %117, %119 : vector<8x128xf32>
    %121 = math.tanh %120 : vector<8x128xf32>
    %cst_34 = arith.constant 1.000000e+00 : f32
    %122 = vector.broadcast %cst_34 : f32 to vector<8x128xf32>
    %123 = arith.subf %122, %116 : vector<8x128xf32>
    %124 = arith.mulf %123, %121 : vector<8x128xf32>
    %125 = arith.mulf %116, %88 : vector<8x128xf32>
    %126 = arith.addf %124, %125 : vector<8x128xf32>
    %c2_i32 = arith.constant 2 : i32
    %127 = arith.addi %6, %c2_i32 : i32
    %128 = vector.broadcast %127 : i32 to vector<8x1xi32>
    %129 = arith.cmpi slt, %128, %3 : vector<8x1xi32>
    %130 = vector.shape_cast %129 : vector<8x1xi1> to vector<8x1xi1>
    %131 = vector.broadcast %130 : vector<8x1xi1> to vector<8x128xi1>
    %132 = arith.select %131, %126, %88 : vector<8x128xi1>, vector<8x128xf32>
    %cst_35 = arith.constant 0.000000e+00 : f32
    %133 = vector.shape_cast %129 : vector<8x1xi1> to vector<8x1xi1>
    %134 = vector.broadcast %133 : vector<8x1xi1> to vector<8x128xi1>
    %135 = vector.broadcast %cst_35 : f32 to vector<8x128xf32>
    %136 = arith.select %134, %126, %135 : vector<8x128xi1>, vector<8x128xf32>
    %c2_36 = arith.constant 2 : index
    %c0_37 = arith.constant 0 : index
    %c0_38 = arith.constant 0 : index
    %137 = vector.load %arg5[%c2_36, %c0_37, %c0_38] : memref<4x8x128xf32, #tpu.memory_space<vmem>>, vector<1x8x128xf32>
    %138 = vector.shape_cast %137 : vector<1x8x128xf32> to vector<8x128xf32>
    %139 = vector.shape_cast %136 : vector<8x128xf32> to vector<1x8x128xf32>
    tpu.vector_store %arg5[%c2_36, %c0_37, %c0_38], %139 {strides = array<i32>} : memref<4x8x128xf32, #tpu.memory_space<vmem>>, vector<1x8x128xf32>,
    %c3 = arith.constant 3 : index
    %c0_39 = arith.constant 0 : index
    %c0_40 = arith.constant 0 : index
    %140 = vector.load %arg2[%c3, %c0_39, %c0_40] : memref<4x8x384xf32, #tpu.memory_space<vmem>>, vector<1x8x384xf32>
    %141 = vector.shape_cast %140 : vector<1x8x384xf32> to vector<8x384xf32>
    %cst_41 = arith.constant dense<0.000000e+00> : vector<8x384xf32>
    %142 = tpu.matmul %132, %4, %cst_41 {dimension_numbers = #tpu.dot_dimension_numbers<[1], [0], [0], [1], [0, 0, 1, 1], [], []>} : vector<8x128xf32>, vector<128x384xf32>, vector<8x384xf32> -> vector<8x384xf32>
    %143 = vector.broadcast %5 : vector<1x384xf32> to vector<8x384xf32>
    %144 = arith.addf %142, %143 : vector<8x384xf32>
    %145 = vector.extract_strided_slice %141 {offsets = [0, 0], sizes = [8, 128], strides = [1, 1]} : vector<8x384xf32> to vector<8x128xf32>
    %146 = vector.extract_strided_slice %144 {offsets = [0, 0], sizes = [8, 128], strides = [1, 1]} : vector<8x384xf32> to vector<8x128xf32>
    %147 = arith.addf %145, %146 : vector<8x128xf32>
    %148 = arith.negf %147 : vector<8x128xf32>
    %149 = math.exp %148 : vector<8x128xf32>
    %cst_42 = arith.constant 1.000000e+00 : f32
    %150 = vector.broadcast %cst_42 : f32 to vector<8x128xf32>
    %151 = arith.addf %150, %149 : vector<8x128xf32>
    %152 = arith.divf %150, %151 : vector<8x128xf32>
    %153 = vector.extract_strided_slice %141 {offsets = [0, 128], sizes = [8, 128], strides = [1, 1]} : vector<8x384xf32> to vector<8x128xf32>
    %154 = vector.extract_strided_slice %144 {offsets = [0, 128], sizes = [8, 128], strides = [1, 1]} : vector<8x384xf32> to vector<8x128xf32>
    %155 = arith.addf %153, %154 : vector<8x128xf32>
    %156 = arith.negf %155 : vector<8x128xf32>
    %157 = math.exp %156 : vector<8x128xf32>
    %cst_43 = arith.constant 1.000000e+00 : f32
    %158 = vector.broadcast %cst_43 : f32 to vector<8x128xf32>
    %159 = arith.addf %158, %157 : vector<8x128xf32>
    %160 = arith.divf %158, %159 : vector<8x128xf32>
    %161 = vector.extract_strided_slice %141 {offsets = [0, 256], sizes = [8, 128], strides = [1, 1]} : vector<8x384xf32> to vector<8x128xf32>
    %162 = vector.extract_strided_slice %144 {offsets = [0, 256], sizes = [8, 128], strides = [1, 1]} : vector<8x384xf32> to vector<8x128xf32>
    %163 = arith.mulf %152, %162 : vector<8x128xf32>
    %164 = arith.addf %161, %163 : vector<8x128xf32>
    %165 = math.tanh %164 : vector<8x128xf32>
    %cst_44 = arith.constant 1.000000e+00 : f32
    %166 = vector.broadcast %cst_44 : f32 to vector<8x128xf32>
    %167 = arith.subf %166, %160 : vector<8x128xf32>
    %168 = arith.mulf %167, %165 : vector<8x128xf32>
    %169 = arith.mulf %160, %132 : vector<8x128xf32>
    %170 = arith.addf %168, %169 : vector<8x128xf32>
    %c3_i32 = arith.constant 3 : i32
    %171 = arith.addi %6, %c3_i32 : i32
    %172 = vector.broadcast %171 : i32 to vector<8x1xi32>
    %173 = arith.cmpi slt, %172, %3 : vector<8x1xi32>
    %174 = vector.shape_cast %173 : vector<8x1xi1> to vector<8x1xi1>
    %175 = vector.broadcast %174 : vector<8x1xi1> to vector<8x128xi1>
    %176 = arith.select %175, %170, %132 : vector<8x128xi1>, vector<8x128xf32>
    %cst_45 = arith.constant 0.000000e+00 : f32
    %177 = vector.shape_cast %173 : vector<8x1xi1> to vector<8x1xi1>
    %178 = vector.broadcast %177 : vector<8x1xi1> to vector<8x128xi1>
    %179 = vector.broadcast %cst_45 : f32 to vector<8x128xf32>
    %180 = arith.select %178, %170, %179 : vector<8x128xi1>, vector<8x128xf32>
    %c3_46 = arith.constant 3 : index
    %c0_47 = arith.constant 0 : index
    %c0_48 = arith.constant 0 : index
    %181 = vector.load %arg5[%c3_46, %c0_47, %c0_48] : memref<4x8x128xf32, #tpu.memory_space<vmem>>, vector<1x8x128xf32>
    %182 = vector.shape_cast %181 : vector<1x8x128xf32> to vector<8x128xf32>
    %183 = vector.shape_cast %180 : vector<8x128xf32> to vector<1x8x128xf32>
    tpu.vector_store %arg5[%c3_46, %c0_47, %c0_48], %183 {strides = array<i32>} : memref<4x8x128xf32, #tpu.memory_space<vmem>>, vector<1x8x128xf32>,
    %c0_49 = arith.constant 0 : index
    %c0_50 = arith.constant 0 : index
    %184 = vector.load %arg7[%c0_49, %c0_50] : memref<8x128xf32, #tpu.memory_space<vmem>>, vector<8x128xf32>
    tpu.vector_store %arg7[%c0_49, %c0_50], %176 {strides = array<i32>} : memref<8x128xf32, #tpu.memory_space<vmem>>, vector<8x128xf32>,
    %c1_i32_51 = arith.constant 1 : i32
    %185 = arith.cmpi eq, %arg0, %c1_i32_51 : i32
    %186 = arith.extui %185 : i1 to i32
    %c0_i32_52 = arith.constant 0 : i32
    %187 = arith.cmpi ne, %186, %c0_i32_52 : i32
    scf.if %187 {
      %c0_53 = arith.constant 0 : index
      %c0_54 = arith.constant 0 : index
      %188 = vector.load %arg7[%c0_53, %c0_54] : memref<8x128xf32, #tpu.memory_space<vmem>>, vector<8x128xf32>
      %c0_55 = arith.constant 0 : index
      %c0_56 = arith.constant 0 : index
      %189 = vector.load %arg6[%c0_55, %c0_56] : memref<8x128xf32, #tpu.memory_space<vmem>>, vector<8x128xf32>
      tpu.vector_store %arg6[%c0_55, %c0_56], %188 {strides = array<i32>} : memref<8x128xf32, #tpu.memory_space<vmem>>, vector<8x128xf32>,
    } else {
    }
    return
  }
  func.func @transform_0(%arg0: i32) -> (i32, i32) {
    %c0_i32 = arith.constant 0 : i32
    %c0_i32_0 = arith.constant 0 : i32
    %c0_i32_1 = arith.constant 0 : i32
    return %c0_i32, %c0_i32_0 : i32, i32
  }
  func.func @transform_1(%arg0: i32) -> (i32, i32, i32) {
    %c0_i32 = arith.constant 0 : i32
    %c0_i32_0 = arith.constant 0 : i32
    %c0_i32_1 = arith.constant 0 : i32
    return %arg0, %c0_i32, %c0_i32_0 : i32, i32, i32
  }
  func.func @transform_2(%arg0: i32) -> (i32, i32) {
    %c0_i32 = arith.constant 0 : i32
    %c0_i32_0 = arith.constant 0 : i32
    %c0_i32_1 = arith.constant 0 : i32
    return %c0_i32, %c0_i32_0 : i32, i32
  }
  func.func @transform_3(%arg0: i32) -> (i32, i32) {
    %c0_i32 = arith.constant 0 : i32
    %c0_i32_0 = arith.constant 0 : i32
    %c0_i32_1 = arith.constant 0 : i32
    return %c0_i32, %c0_i32_0 : i32, i32
  }
  func.func @transform_4(%arg0: i32) -> (i32, i32, i32) {
    %c0_i32 = arith.constant 0 : i32
    %c0_i32_0 = arith.constant 0 : i32
    %c0_i32_1 = arith.constant 0 : i32
    return %arg0, %c0_i32, %c0_i32_0 : i32, i32, i32
  }
  func.func @transform_5(%arg0: i32) -> (i32, i32) {
    %c0_i32 = arith.constant 0 : i32
    %c0_i32_0 = arith.constant 0 : i32
    %c0_i32_1 = arith.constant 0 : i32
    return %c0_i32, %c0_i32_0 : i32, i32
  }
}

</mosaic_0001>

<llo_original>
// kernel: tpu_custom_call.1
$region0: #{tpu_custom_call.1}
  #allocation0 [shape = 'u32[]', space=smem, size = 0x4, offset = 0x4, fixed_abs, tag = 'smem constant byte address 0x4 - core index']
  #allocation1 [shape = 'u32[144,128]{1,0:T(1,128)}', space=vmem, size = 0x12000, scoped, tag = 'internal scratch']
  #allocation2 [shape = 'f32[8,128]{1,0:T(8,128)}', space=vmem, size = 0x1000, scoped, tag = 'scratch operand']
  %s0 = inlined_call_operand.vmem [shape: s32[8,1], index: 0, kind: input, shape index: {}]
  %s1 = inlined_call_operand.hbm [shape: f32[8,8,384], index: 1, kind: input, shape index: {}]
  %s2 = inlined_call_operand.hbm [shape: f32[128,384], index: 2, kind: input, shape index: {}]
  %s3 = inlined_call_operand.vmem [shape: f32[1,384], index: 3, kind: input, shape index: {}]
  %s4 = inlined_call_operand.hbm [shape: f32[8,8,128], index: 4, kind: output, shape index: {0}]
  %s5 = inlined_call_operand.hbm [shape: f32[8,128], index: 5, kind: output, shape index: {1}]
  %6 = xla_tuple %s4, %s5
  %s7 = sld [smem:[#allocation0]]
  $region73: #{tpu_custom_call.1} parent=0
    _
  %s9 = ssub.s32 1, %s7
  %s10 = scalar_select 0, %s9, %s7
  $region1: #{tpu_custom_call.1} parent=0
    #allocation3 [shape = 'u8[98304]{0}', space=vmem, size = 0x18000, scoped, tag = 'input window, operand 1']
    #allocation4 [shape = 's32[2]{0}', space=sflag, size = 0x8, scoped, tag = 'scoped memory for tpu_custom_call.1']
    #allocation5 [shape = 's32[2]{0}', space=sflag, size = 0x8, scoped, tag = 'scoped memory for tpu_custom_call.1']
    #allocation6 [shape = 'u8[196608]{0}', space=vmem, size = 0x30000, scoped, tag = 'input window, operand 2, single buffered']
    #allocation7 [shape = 's32[1]{0}', space=sflag, size = 0x4, scoped, tag = 'scoped memory for tpu_custom_call.1']
    #allocation8 [shape = 'u8[32768]{0}', space=vmem, size = 0x8000, scoped, tag = 'output window, operand 0']
    #allocation9 [shape = 'u8[4096]{0}', space=vmem, size = 0x1000, scoped, tag = 'output window, operand 1, single buffered']
    #allocation10 [shape = 's32[1]{0}', space=sflag, size = 0x4, scoped, tag = 'scoped memory for tpu_custom_call.1']
    %11 = vsyncpa [#allocation4], 0
    %s12 = scalar_lea.sflag [#allocation4], 1
    %13 = vsyncpa %s12, 0
    %14 = vsyncpa [#allocation7], 0
    %15 = vsyncpa [#allocation5], 0
    %s16 = scalar_lea.sflag [#allocation5], 1
    %17 = vsyncpa %s16, 0
    %18 = vsyncpa [#allocation10], 0
    loop: start=0, step=1, limit=4
    $region2: #{tpu_custom_call.1} parent=1 // loop_pre_header
      _
    $region3: #{tpu_custom_call.1} parent=1 // loop_header
      %s20 = sphi 0, %s24
      %p21 = scmp.ge.s32.totalorder %s20, 4
      %s28 = sphi 0, %s28
      %s30 = sphi 0, %s28
      %s31 = sphi 0, %s30
      %s45 = sphi 0, %s31
      %s51 = sphi 0, %s53
      %s54 = sphi 0, %s51
      %s55 = sphi 0, %s54
      %s71 = sphi 0, %s55
      %s75 = sphi 0, %s75
      %s77 = sphi 0, %s75
      %s78 = sphi 0, %s77
      %s92 = sphi 0, %s78
      %s96 = sphi 0, %s96
      %s98 = sphi 0, %s96
      %s99 = sphi 0, %s98
      %s113 = sphi 0, %s99
      %s119 = sphi 0, %s121
      %s122 = sphi 0, %s119
      %s123 = sphi 0, %s122
      %s139 = sphi 0, %s123
      %s143 = sphi 0, %s143
      %s145 = sphi 0, %s143
      %s146 = sphi 0, %s145
      %s160 = sphi 0, %s146
    $region4: #{tpu_custom_call.1} parent=1 // loop_header_branch
      %23 = sbr.rel (%p21) target = $region8
    $region5: #{tpu_custom_call.1} parent=1 // loop_body
      %s25 = ssub.s32 %s20, 1
      %s26 = ssub.s32 %s20, 2
      %s27 = sadd.s32 %s20, 1
      %s29 = sadd.s32 %s28, 1
      %p32 = scmp.eq.s32.totalorder %s20, 1
      %p33 = scmp.ne.s32.totalorder %s28, %s30
      %p34 = scmp.eq.s32.totalorder %s20, 0
      %p35 = por %p33, %p34
      %p36 = scmp.ne.s32.totalorder %s28, %s30
      %p37 = scmp.eq.s32.totalorder %s25, 1
      %p38 = por %p36, %p37
      %p39 = scmp.ne.s32.totalorder %s30, %s31
      %p40 = scmp.eq.s32.totalorder %s25, 0
      %p41 = por %p39, %p40
      %p42 = scmp.ne.s32.totalorder %s30, %s31
      %p43 = scmp.eq.s32.totalorder %s26, 1
      %p44 = por %p42, %p43
      %p46 = scmp.ne.s32.totalorder %s31, %s45
      %p47 = scmp.eq.s32.totalorder %s26, 0
      %p48 = por %p46, %p47
      %s49 = ssub.s32 %s20, %s27
      %p50 = scmp.eq.s32.totalorder %s49, 0
      %s52 = sadd.s32 %s51, 1
      %s53 = scalar_select %p50, %s51, %s52
      %p56 = pneg %p50
      %p57 = scmp.eq.s32.totalorder %s20, 1
      %p58 = por %p56, %p57
      %p59 = scmp.ne.s32.totalorder %s51, %s54
      %p60 = scmp.eq.s32.totalorder %s20, 0
      %p61 = por %p59, %p60
      %p62 = scmp.ne.s32.totalorder %s51, %s54
      %p63 = scmp.eq.s32.totalorder %s25, 1
      %p64 = por %p62, %p63
      %p65 = scmp.ne.s32.totalorder %s54, %s55
      %p66 = scmp.eq.s32.totalorder %s25, 0
      %p67 = por %p65, %p66
      %p68 = scmp.ne.s32.totalorder %s54, %s55
      %p69 = scmp.eq.s32.totalorder %s26, 1
      %p70 = por %p68, %p69
      %p72 = scmp.ne.s32.totalorder %s55, %s71
      %p73 = scmp.eq.s32.totalorder %s26, 0
      %p74 = por %p72, %p73
      %s76 = sadd.s32 %s75, 1
      %p79 = scmp.eq.s32.totalorder %s20, 1
      %p80 = scmp.ne.s32.totalorder %s75, %s77
      %p81 = scmp.eq.s32.totalorder %s20, 0
      %p82 = por %p80, %p81
      %p83 = scmp.ne.s32.totalorder %s75, %s77
      %p84 = scmp.eq.s32.totalorder %s25, 1
      %p85 = por %p83, %p84
      %p86 = scmp.ne.s32.totalorder %s77, %s78
      %p87 = scmp.eq.s32.totalorder %s25, 0
      %p88 = por %p86, %p87
      %p89 = scmp.ne.s32.totalorder %s77, %s78
      %p90 = scmp.eq.s32.totalorder %s26, 1
      %p91 = por %p89, %p90
      %p93 = scmp.ne.s32.totalorder %s78, %s92
      %p94 = scmp.eq.s32.totalorder %s26, 0
      %p95 = por %p93, %p94
      %s97 = sadd.s32 %s96, 1
      %p100 = scmp.eq.s32.totalorder %s20, 1
      %p101 = scmp.ne.s32.totalorder %s96, %s98
      %p102 = scmp.eq.s32.totalorder %s20, 0
      %p103 = por %p101, %p102
      %p104 = scmp.ne.s32.totalorder %s96, %s98
      %p105 = scmp.eq.s32.totalorder %s25, 1
      %p106 = por %p104, %p105
      %p107 = scmp.ne.s32.totalorder %s98, %s99
      %p108 = scmp.eq.s32.totalorder %s25, 0
      %p109 = por %p107, %p108
      %p110 = scmp.ne.s32.totalorder %s98, %s99
      %p111 = scmp.eq.s32.totalorder %s26, 1
      %p112 = por %p110, %p111
      %p114 = scmp.ne.s32.totalorder %s99, %s113
      %p115 = scmp.eq.s32.totalorder %s26, 0
      %p116 = por %p114, %p115
      %s117 = ssub.s32 %s20, %s27
      %p118 = scmp.eq.s32.totalorder %s117, 0
      %s120 = sadd.s32 %s119, 1
      %s121 = scalar_select %p118, %s119, %s120
      %p124 = pneg %p118
      %p125 = scmp.eq.s32.totalorder %s20, 1
      %p126 = por %p124, %p125
      %p127 = scmp.ne.s32.totalorder %s119, %s122
      %p128 = scmp.eq.s32.totalorder %s20, 0
      %p129 = por %p127, %p128
      %p130 = scmp.ne.s32.totalorder %s119, %s122
      %p131 = scmp.eq.s32.totalorder %s25, 1
      %p132 = por %p130, %p131
      %p133 = scmp.ne.s32.totalorder %s122, %s123
      %p134 = scmp.eq.s32.totalorder %s25, 0
      %p135 = por %p133, %p134
      %p136 = scmp.ne.s32.totalorder %s122, %s123
      %p137 = scmp.eq.s32.totalorder %s26, 1
      %p138 = por %p136, %p137
      %p140 = scmp.ne.s32.totalorder %s123, %s139
      %p141 = scmp.eq.s32.totalorder %s26, 0
      %p142 = por %p140, %p141
      %s144 = sadd.s32 %s143, 1
      %p147 = scmp.eq.s32.totalorder %s20, 1
      %p148 = scmp.ne.s32.totalorder %s143, %s145
      %p149 = scmp.eq.s32.totalorder %s20, 0
      %p150 = por %p148, %p149
      %p151 = scmp.ne.s32.totalorder %s143, %s145
      %p152 = scmp.eq.s32.totalorder %s25, 1
      %p153 = por %p151, %p152
      %p154 = scmp.ne.s32.totalorder %s145, %s146
      %p155 = scmp.eq.s32.totalorder %s25, 0
      %p156 = por %p154, %p155
      %p157 = scmp.ne.s32.totalorder %s145, %s146
      %p158 = scmp.eq.s32.totalorder %s26, 1
      %p159 = por %p157, %p158
      %p161 = scmp.ne.s32.totalorder %s146, %s160
      %p162 = scmp.eq.s32.totalorder %s26, 0
      %p163 = por %p161, %p162
      %p164 = scmp.le.s32.totalorder 1, %s20
      %p165 = scmp.lt.s32.totalorder %s20, 3
      %p166 = pnand %p164, %p165
      %p167 = pneg %p166
      // Predicated region
      $region9: #{tpu_custom_call.1} parent=5 // pred_check
        _
      $region10: #{tpu_custom_call.1} parent=5 // pred_check_branch
        %169 = sbr.rel (%p166) target = $region12
      $region11: #{tpu_custom_call.1} parent=5 // pred_region
        %s170 = ssub.s32 %s20, 1
        // Predicated region
        $region13: #{tpu_custom_call.1} parent=11 // pred_check
          %p171 = pneg %p41
        $region14: #{tpu_custom_call.1} parent=11 // pred_check_branch
          %173 = sbr.rel (%p171) target = $region16
        $region15: #{tpu_custom_call.1} parent=11 // pred_region
          _
        $region16: #{tpu_custom_call.1} parent=11 // pred_fallthru
          _
        // Predicated region
        $region17: #{tpu_custom_call.1} parent=11 // pred_check
          %p174 = pneg %p88
        $region18: #{tpu_custom_call.1} parent=11 // pred_check_branch
          %176 = sbr.rel (%p174) target = $region20
        $region19: #{tpu_custom_call.1} parent=11 // pred_region
          %s178 = ssub.s32 6144, 6144
          %179 = vsyncadd [#allocation7], %s178
          %s180 = sshll.u32 [#allocation6], 4
          %s181 = int_to_ptr.vmem [resolvable:$true] %s180
          %186 = dma.hbm_to_vmem [thread:$0]  %s2, 6144, %s181, [#allocation7], 384, 384, 24
        $region20: #{tpu_custom_call.1} parent=11 // pred_fallthru
          _
        // Predicated region
        $region21: #{tpu_custom_call.1} parent=11 // pred_check
          %p187 = pneg %p109
        $region22: #{tpu_custom_call.1} parent=11 // pred_check_branch
          %189 = sbr.rel (%p187) target = $region24
        $region23: #{tpu_custom_call.1} parent=11 // pred_region
          _
        $region24: #{tpu_custom_call.1} parent=11 // pred_fallthru
          _
      $region12: #{tpu_custom_call.1} parent=5 // pred_fallthru
        _
      %p190 = scmp.lt.s32.totalorder %s20, 2
      // Predicated region
      $region25: #{tpu_custom_call.1} parent=5 // pred_check
        %p191 = pneg %p190
      $region26: #{tpu_custom_call.1} parent=5 // pred_check_branch
        %193 = sbr.rel (%p191) target = $region28
      $region27: #{tpu_custom_call.1} parent=5 // pred_region
        // Predicated region
        $region29: #{tpu_custom_call.1} parent=27 // pred_check
          %p194 = pneg %p61
        $region30: #{tpu_custom_call.1} parent=27 // pred_check_branch
          %196 = sbr.rel (%p194) target = $region32
        $region31: #{tpu_custom_call.1} parent=27 // pred_region
          %s197 = sand.u32 %s51, 1
          %s198 = scalar_lea.sflag [#allocation4], %s197
          %s199 = sand.u32 %s51, 1
          %s200 = smul.addr %s199, 96
          %s201 = scalar_lea.vmem [#allocation3], %s200
          %s202 = smul.u32 4, %s20
          %s204 = ssub.s32 1536, 1536
          %205 = vsyncadd %s198, %s204
          %s206 = smul.addr %s202, 3
          %s207 = smul.addr %s206, 128
          %s208 = scalar_lea.hbm %s1, %s207
          %s209 = sshll.u32 %s201, 4
          %s210 = int_to_ptr.vmem [resolvable:$true] %s209
          %215 = dma.hbm_to_vmem [thread:$0]  %s208, 1536, %s210, %s198, 384, 384, 24
        $region32: #{tpu_custom_call.1} parent=27 // pred_fallthru
          _
      $region28: #{tpu_custom_call.1} parent=5 // pred_fallthru
        _
      %p216 = scmp.le.s32.totalorder 1, %s20
      %p217 = scmp.lt.s32.totalorder %s20, 3
      %p218 = pnand %p216, %p217
      %p219 = pneg %p218
      // Predicated region
      $region33: #{tpu_custom_call.1} parent=5 // pred_check
        _
      $region34: #{tpu_custom_call.1} parent=5 // pred_check_branch
        %221 = sbr.rel (%p218) target = $region36
      $region35: #{tpu_custom_call.1} parent=5 // pred_region
        %s222 = ssub.s32 %s20, 1
        %s223 = sand.u32 %s54, 1
        %s224 = scalar_lea.sflag [#allocation4], %s223
        %s225 = sand.u32 %s54, 1
        %s226 = smul.addr %s225, 96
        %s227 = scalar_lea.vmem [#allocation3], %s226
        // Predicated region
        $region37: #{tpu_custom_call.1} parent=35 // pred_check
          %p228 = pneg %p67
        $region38: #{tpu_custom_call.1} parent=35 // pred_check_branch
          %230 = sbr.rel (%p228) target = $region40
        $region39: #{tpu_custom_call.1} parent=35 // pred_region
          %231 = dma.done %s224, 1536
        $region40: #{tpu_custom_call.1} parent=35 // pred_fallthru
          _
        // Predicated region
        $region41: #{tpu_custom_call.1} parent=35 // pred_check
          %p232 = pneg %p88
        $region42: #{tpu_custom_call.1} parent=35 // pred_check_branch
          %234 = sbr.rel (%p232) target = $region44
        $region43: #{tpu_custom_call.1} parent=35 // pred_region
          %235 = dma.done [#allocation7], 6144
        $region44: #{tpu_custom_call.1} parent=35 // pred_fallthru
          _
        %p236 = pneg %p41
        %p237 = pneg %p38
        %s238 = sand.u32 %s54, 1
        %s239 = scalar_lea.sflag [#allocation4], %s238
        %s240 = sand.u32 %s54, 1
        %s241 = smul.addr %s240, 96
        %s242 = scalar_lea.vmem [#allocation3], %s241
        %p243 = pneg %p67
        %p244 = pneg %p64
        %p245 = pneg %p88
        %p246 = pneg %p85
        %p247 = pneg %p109
        %p248 = pneg %p106
        %p249 = pneg %p135
        %p250 = pneg %p132
        %s251 = sand.u32 %s122, 1
        %s252 = scalar_lea.sflag [#allocation5], %s251
        %s253 = sand.u32 %s122, 1
        %s254 = smul.addr %s253, 32
        %s255 = scalar_lea.vmem [#allocation8], %s254
        %p256 = pneg %p156
        %p257 = pneg %p153
        %s258 = smul.u32 4, %s25
        %s259 = smul.u32 4, %s25
        %p260 = scmp.eq.s32.totalorder %s25, 0
        // Predicated region
        $region45: #{tpu_custom_call.1} parent=35 // pred_check
          %p261 = pneg %p260
        $region46: #{tpu_custom_call.1} parent=35 // pred_check_branch
          %263 = sbr.rel (%p261) target = $region48
        $region47: #{tpu_custom_call.1} parent=35 // pred_region
          %264 = vst [vmem:[#allocation2] sm:$0xff] 0.0
        $region48: #{tpu_custom_call.1} parent=35 // pred_fallthru
          _
        %v265 = vld [vmem:[%s0] sm:$0xff]
        %v266 = vld [vmem:[#allocation6] sm:$0xff]
        %v267 = vld [vmem:[#allocation6 + $0x8] sm:$0xff]
        %v268 = vld [vmem:[#allocation6 + $0x10] sm:$0xff]
        %v269 = vld [vmem:[#allocation6 + $0x18] sm:$0xff]
        %v270 = vld [vmem:[#allocation6 + $0x20] sm:$0xff]
        %v271 = vld [vmem:[#allocation6 + $0x28] sm:$0xff]
        %v272 = vld [vmem:[#allocation6 + $0x30] sm:$0xff]
        %v273 = vld [vmem:[#allocation6 + $0x38] sm:$0xff]
        %v274 = vld [vmem:[#allocation6 + $0x40] sm:$0xff]
        %v275 = vld [vmem:[#allocation6 + $0x48] sm:$0xff]
        %v276 = vld [vmem:[#allocation6 + $0x50] sm:$0xff]
        %v277 = vld [vmem:[#allocation6 + $0x58] sm:$0xff]
        %v278 = vld [vmem:[#allocation6 + $0x60] sm:$0xff]
        %v279 = vld [vmem:[#allocation6 + $0x68] sm:$0xff]
        %v280 = vld [vmem:[#allocation6 + $0x70] sm:$0xff]
        %v281 = vld [vmem:[#allocation6 + $0x78] sm:$0xff]
        %v282 = vld [vmem:[#allocation6 + $0x80] sm:$0xff]
        %v283 = vld [vmem:[#allocation6 + $0x88] sm:$0xff]
        %v284 = vld [vmem:[#allocation6 + $0x90] sm:$0xff]
        %v285 = vld [vmem:[#allocation6 + $0x98] sm:$0xff]
        %v286 = vld [vmem:[#allocation6 + $0xa0] sm:$0xff]
        %v287 = vld [vmem:[#allocation6 + $0xa8] sm:$0xff]
        %v288 = vld [vmem:[#allocation6 + $0xb0] sm:$0xff]
        %v289 = vld [vmem:[#allocation6 + $0xb8] sm:$0xff]
        %v290 = vld [vmem:[#allocation6 + $0xc0] sm:$0xff]
        %v291 = vld [vmem:[#allocation6 + $0xc8] sm:$0xff]
        %v292 = vld [vmem:[#allocation6 + $0xd0] sm:$0xff]
        %v293 = vld [vmem:[#allocation6 + $0xd8] sm:$0xff]
        %v294 = vld [vmem:[#allocation6 + $0xe0] sm:$0xff]
        %v295 = vld [vmem:[#allocation6 + $0xe8] sm:$0xff]
        %v296 = vld [vmem:[#allocation6 + $0xf0] sm:$0xff]
        %v297 = vld [vmem:[#allocation6 + $0xf8] sm:$0xff]
        %v298 = vld [vmem:[#allocation6 + $0x100] sm:$0xff]
        %v299 = vld [vmem:[#allocation6 + $0x108] sm:$0xff]
        %v300 = vld [vmem:[#allocation6 + $0x110] sm:$0xff]
        %v301 = vld [vmem:[#allocation6 + $0x118] sm:$0xff]
        %v302 = vld [vmem:[#allocation6 + $0x120] sm:$0xff]
        %v303 = vld [vmem:[#allocation6 + $0x128] sm:$0xff]
        %v304 = vld [vmem:[#allocation6 + $0x130] sm:$0xff]
        %v305 = vld [vmem:[#allocation6 + $0x138] sm:$0xff]
        %v306 = vld [vmem:[#allocation6 + $0x140] sm:$0xff]
        %v307 = vld [vmem:[#allocation6 + $0x148] sm:$0xff]
        %v308 = vld [vmem:[#allocation6 + $0x150] sm:$0xff]
        %v309 = vld [vmem:[#allocation6 + $0x158] sm:$0xff]
        %v310 = vld [vmem:[#allocation6 + $0x160] sm:$0xff]
        %v311 = vld [vmem:[#allocation6 + $0x168] sm:$0xff]
        %v312 = vld [vmem:[#allocation6 + $0x170] sm:$0xff]
        %v313 = vld [vmem:[#allocation6 + $0x178] sm:$0xff]
        %v314 = vld [vmem:[%s3] sm:$0x7]
        %s315 = smul.u32 %s25, 4
        %v316 = vld [vmem:[#allocation2] sm:$0xff]
        %v317 = vld [vmem:[%s227] sm:$0xff]
        %v318 = vld [vmem:[%s227 + $0x8] sm:$0xff]
        %v319 = vld [vmem:[%s227 + $0x10] sm:$0xff]
        %v321 = vlaneseq
        %v322 = vshrl.u32 %v321, 7
        %v323 = vsub.s32 0, %v322
        %v324 = vrot.slane %v314, %v323
        %v325 = vlaneseq
        %v326 = vshrl.u32 %v325, 7
        %v327 = vsub.s32 1, %v326
        %v328 = vrot.slane %v314, %v327
        %v329 = vlaneseq
        %v330 = vshrl.u32 %v329, 7
        %v331 = vsub.s32 2, %v330
        %v332 = vrot.slane %v314, %v331
        %336 = vmatprep.subr.mxu0 %v267
        %337 = vmatpush1.msra.mxu0 %v266
        %338 = vmatprep.subr.mxu0 %v270
        %339 = vmatpush1.msra.mxu0 %v269
        %340 = vmatprep.subr.mxu0 %v273
        %341 = vmatpush1.msra.mxu0 %v272
        %342 = vmatprep.subr.mxu0 %v276
        %343 = vmatpush1.msra.mxu0 %v275
        %344 = vmatprep.subr.mxu0 %v279
        %345 = vmatpush1.msra.mxu0 %v278
        %346 = vmatprep.subr.mxu0 %v282
        %347 = vmatpush1.msra.mxu0 %v281
        %348 = vmatprep.subr.mxu0 %v285
        %349 = vmatpush1.msra.mxu0 %v284
        %350 = vmatprep.subr.mxu0 %v288
        %351 = vmatpush1.msra.mxu0 %v287
        %352 = vmatprep.subr.mxu0 %v291
        %353 = vmatpush1.msra.mxu0 %v290
        %354 = vmatprep.subr.mxu0 %v294
        %355 = vmatpush1.msra.mxu0 %v293
        %356 = vmatprep.subr.mxu0 %v297
        %357 = vmatpush1.msra.mxu0 %v296
        %358 = vmatprep.subr.mxu0 %v300
        %359 = vmatpush1.msra.mxu0 %v299
        %360 = vmatprep.subr.mxu0 %v303
        %361 = vmatpush1.msra.mxu0 %v302
        %362 = vmatprep.subr.mxu0 %v306
        %363 = vmatpush1.msra.mxu0 %v305
        %364 = vmatprep.subr.mxu0 %v309
        %365 = vmatpush1.msra.mxu0 %v308
        %366 = vmatprep.subr.mxu0 %v312
        %367 = vmatpush1.msra.mxu0 %v311
        %368 = vmatprep.subr.mxu0 0.0
        %369 = vmatpush1.msra.mxu0 0.0
        %370 = vmatprep.subr.mxu0 0.0
        %371 = vmatpush1.msra.mxu0 0.0
        %372 = vmatprep.subr.mxu0 0.0
        %373 = vmatpush1.msra.mxu0 0.0
        %374 = vmatprep.subr.mxu0 0.0
        %375 = vmatpush1.msra.mxu0 0.0
        %376 = vmatprep.subr.mxu0 0.0
        %377 = vmatpush1.msra.mxu0 0.0
        %378 = vmatprep.subr.mxu0 0.0
        %379 = vmatpush1.msra.mxu0 0.0
        %380 = vmatprep.subr.mxu0 0.0
        %381 = vmatpush1.msra.mxu0 0.0
        %382 = vmatprep.subr.mxu0 0.0
        %383 = vmatpush1.msra.mxu0 0.0
        %384 = vmatprep.subr.mxu0 0.0
        %385 = vmatpush1.msra.mxu0 0.0
        %386 = vmatprep.subr.mxu0 0.0
        %387 = vmatpush1.msra.mxu0 0.0
        %388 = vmatprep.subr.mxu0 0.0
        %389 = vmatpush1.msra.mxu0 0.0
        %390 = vmatprep.subr.mxu0 0.0
        %391 = vmatpush1.msra.mxu0 0.0
        %392 = vmatprep.subr.mxu0 0.0
        %393 = vmatpush1.msra.mxu0 0.0
        %394 = vmatprep.subr.mxu0 0.0
        %395 = vmatpush1.msra.mxu0 0.0
        %396 = vmatprep.subr.mxu0 0.0
        %397 = vmatpush1.msra.mxu0 0.0
        %398 = vmatprep.subr.mxu0 0.0
        %399 = vmatpush1.msra.mxu0 0.0
        %400 = vmatprep.mubr.f32.mxu0 0.0
        %401 = vmatmul.mubr.f32.gmra.mrb[0].mxu0 %v316
        %v402 = vpop.f32.mrb[0].mxu0
        %v403 = vadd.f32 %v324, %v402
        %v404 = vpop.f32.mrb[0].mxu0
        %v405 = vadd.f32 %v328, %v404
        %406 = vdwg.mxu0
        %407 = vmatprep.subr.mxu0 0.0
        %408 = vmatpush1.msra.mxu0 %v268
        %409 = vmatprep.subr.mxu0 0.0
        %410 = vmatpush1.msra.mxu0 %v271
        %411 = vmatprep.subr.mxu0 0.0
        %412 = vmatpush1.msra.mxu0 %v274
        %413 = vmatprep.subr.mxu0 0.0
        %414 = vmatpush1.msra.mxu0 %v277
        %415 = vmatprep.subr.mxu0 0.0
        %416 = vmatpush1.msra.mxu0 %v280
        %417 = vmatprep.subr.mxu0 0.0
        %418 = vmatpush1.msra.mxu0 %v283
        %419 = vmatprep.subr.mxu0 0.0
        %420 = vmatpush1.msra.mxu0 %v286
        %421 = vmatprep.subr.mxu0 0.0
        %422 = vmatpush1.msra.mxu0 %v289
        %423 = vmatprep.subr.mxu0 0.0
        %424 = vmatpush1.msra.mxu0 %v292
        %425 = vmatprep.subr.mxu0 0.0
        %426 = vmatpush1.msra.mxu0 %v295
        %427 = vmatprep.subr.mxu0 0.0
        %428 = vmatpush1.msra.mxu0 %v298
        %429 = vmatprep.subr.mxu0 0.0
        %430 = vmatpush1.msra.mxu0 %v301
        %431 = vmatprep.subr.mxu0 0.0
        %432 = vmatpush1.msra.mxu0 %v304
        %433 = vmatprep.subr.mxu0 0.0
        %434 = vmatpush1.msra.mxu0 %v307
        %435 = vmatprep.subr.mxu0 0.0
        %436 = vmatpush1.msra.mxu0 %v310
        %437 = vmatprep.subr.mxu0 0.0
        %438 = vmatpush1.msra.mxu0 %v313
        %439 = vmatprep.subr.mxu0 0.0
        %440 = vmatpush1.msra.mxu0 0.0
        %441 = vmatprep.subr.mxu0 0.0
        %442 = vmatpush1.msra.mxu0 0.0
        %443 = vmatprep.subr.mxu0 0.0
        %444 = vmatpush1.msra.mxu0 0.0
        %445 = vmatprep.subr.mxu0 0.0
        %446 = vmatpush1.msra.mxu0 0.0
        %447 = vmatprep.subr.mxu0 0.0
        %448 = vmatpush1.msra.mxu0 0.0
        %449 = vmatprep.subr.mxu0 0.0
        %450 = vmatpush1.msra.mxu0 0.0
        %451 = vmatprep.subr.mxu0 0.0
        %452 = vmatpush1.msra.mxu0 0.0
        %453 = vmatprep.subr.mxu0 0.0
        %454 = vmatpush1.msra.mxu0 0.0
        %455 = vmatprep.subr.mxu0 0.0
        %456 = vmatpush1.msra.mxu0 0.0
        %457 = vmatprep.subr.mxu0 0.0
        %458 = vmatpush1.msra.mxu0 0.0
        %459 = vmatprep.subr.mxu0 0.0
        %460 = vmatpush1.msra.mxu0 0.0
        %461 = vmatprep.subr.mxu0 0.0
        %462 = vmatpush1.msra.mxu0 0.0
        %463 = vmatprep.subr.mxu0 0.0
        %464 = vmatpush1.msra.mxu0 0.0
        %465 = vmatprep.subr.mxu0 0.0
        %466 = vmatpush1.msra.mxu0 0.0
        %467 = vmatprep.subr.mxu0 0.0
        %468 = vmatpush1.msra.mxu0 0.0
        %469 = vmatprep.subr.mxu0 0.0
        %470 = vmatpush1.msra.mxu0 0.0
        %471 = vmatprep.mubr.f32.mxu0 0.0
        %472 = vmatmul.mubr.f32.gmra.mrb[0].mxu0 %v316
        %v473 = vpop.f32.mrb[0].mxu0
        %v474 = vadd.f32 %v332, %v473
        %v475 = vpop.f32.mrb[0].mxu0
        %476 = vdwg.mxu0
        %v477 = vadd.f32 %v317, %v403
        %v478 = vxor.u32 %v477, 2147483648
        %v479 = vmul.f32 %v478, 1.442695
        %v480 = vpow.pop %v479
        %v481 = vadd.f32 %v480, 1.0
        %v482 = vrcp.pop %v481
        %v483 = vmul.f32 1.0, %v482
        %v484 = vadd.f32 %v318, %v405
        %v485 = vxor.u32 %v484, 2147483648
        %v486 = vmul.f32 %v485, 1.442695
        %v487 = vpow.pop %v486
        %v488 = vadd.f32 %v487, 1.0
        %v489 = vrcp.pop %v488
        %v490 = vmul.f32 1.0, %v489
        %v491 = vmul.f32 %v483, %v474
        %v492 = vadd.f32 %v319, %v491
        %v493 = vtanh.pop %v492
        %v494 = vsub.f32 1.0, %v490
        %v495 = vmul.f32 %v494, %v493
        %v496 = vmul.f32 %v490, %v316
        %v497 = vadd.f32 %v495, %v496
        %v498 = vstv %s315
        %vm499 = vcmp.lt.s32.totalorder %v498, %v265
        %v500 = vsel %vm499, 1, 0
        %501 = vset.pattern.permute.xlu0 0
        %502 = vperm.xlu0 %501, %v500
        %v503 = vpop.permute.xlu0 %502
        %vm504 = vcmp.eq.s32.totalorder %v503, 1
        %v505 = vsel %vm504, %v497, %v316
        %v506 = vsel %vm504, %v497, 0.0
        %507 = vst [vmem:[%s255] sm:$0xff] %v506
        %s508 = scalar_lea.vmem %s227, 24 [#allocation3]
        %v509 = vld [vmem:[%s508] sm:$0xff]
        %v510 = vld [vmem:[%s508 + $0x8] sm:$0xff]
        %v511 = vld [vmem:[%s508 + $0x10] sm:$0xff]
        %512 = vmatprep.subr.mxu0 %v267
        %513 = vmatpush1.msra.mxu0 %v266
        %514 = vmatprep.subr.mxu0 %v270
        %515 = vmatpush1.msra.mxu0 %v269
        %516 = vmatprep.subr.mxu0 %v273
        %517 = vmatpush1.msra.mxu0 %v272
        %518 = vmatprep.subr.mxu0 %v276
        %519 = vmatpush1.msra.mxu0 %v275
        %520 = vmatprep.subr.mxu0 %v279
        %521 = vmatpush1.msra.mxu0 %v278
        %522 = vmatprep.subr.mxu0 %v282
        %523 = vmatpush1.msra.mxu0 %v281
        %524 = vmatprep.subr.mxu0 %v285
        %525 = vmatpush1.msra.mxu0 %v284
        %526 = vmatprep.subr.mxu0 %v288
        %527 = vmatpush1.msra.mxu0 %v287
        %528 = vmatprep.subr.mxu0 %v291
        %529 = vmatpush1.msra.mxu0 %v290
        %530 = vmatprep.subr.mxu0 %v294
        %531 = vmatpush1.msra.mxu0 %v293
        %532 = vmatprep.subr.mxu0 %v297
        %533 = vmatpush1.msra.mxu0 %v296
        %534 = vmatprep.subr.mxu0 %v300
        %535 = vmatpush1.msra.mxu0 %v299
        %536 = vmatprep.subr.mxu0 %v303
        %537 = vmatpush1.msra.mxu0 %v302
        %538 = vmatprep.subr.mxu0 %v306
        %539 = vmatpush1.msra.mxu0 %v305
        %540 = vmatprep.subr.mxu0 %v309
        %541 = vmatpush1.msra.mxu0 %v308
        %542 = vmatprep.subr.mxu0 %v312
        %543 = vmatpush1.msra.mxu0 %v311
        %544 = vmatprep.subr.mxu0 0.0
        %545 = vmatpush1.msra.mxu0 0.0
        %546 = vmatprep.subr.mxu0 0.0
        %547 = vmatpush1.msra.mxu0 0.0
        %548 = vmatprep.subr.mxu0 0.0
        %549 = vmatpush1.msra.mxu0 0.0
        %550 = vmatprep.subr.mxu0 0.0
        %551 = vmatpush1.msra.mxu0 0.0
        %552 = vmatprep.subr.mxu0 0.0
        %553 = vmatpush1.msra.mxu0 0.0
        %554 = vmatprep.subr.mxu0 0.0
        %555 = vmatpush1.msra.mxu0 0.0
        %556 = vmatprep.subr.mxu0 0.0
        %557 = vmatpush1.msra.mxu0 0.0
        %558 = vmatprep.subr.mxu0 0.0
        %559 = vmatpush1.msra.mxu0 0.0
        %560 = vmatprep.subr.mxu0 0.0
        %561 = vmatpush1.msra.mxu0 0.0
        %562 = vmatprep.subr.mxu0 0.0
        %563 = vmatpush1.msra.mxu0 0.0
        %564 = vmatprep.subr.mxu0 0.0
        %565 = vmatpush1.msra.mxu0 0.0
        %566 = vmatprep.subr.mxu0 0.0
        %567 = vmatpush1.msra.mxu0 0.0
        %568 = vmatprep.subr.mxu0 0.0
        %569 = vmatpush1.msra.mxu0 0.0
        %570 = vmatprep.subr.mxu0 0.0
        %571 = vmatpush1.msra.mxu0 0.0
        %572 = vmatprep.subr.mxu0 0.0
        %573 = vmatpush1.msra.mxu0 0.0
        %574 = vmatprep.subr.mxu0 0.0
        %575 = vmatpush1.msra.mxu0 0.0
        %576 = vmatprep.mubr.f32.mxu0 0.0
        %577 = vmatmul.mubr.f32.gmra.mrb[0].mxu0 %v505
        %v578 = vpop.f32.mrb[0].mxu0
        %v579 = vadd.f32 %v324, %v578
        %v580 = vpop.f32.mrb[0].mxu0
        %v581 = vadd.f32 %v328, %v580
        %582 = vdwg.mxu0
        %583 = vmatprep.subr.mxu0 0.0
        %584 = vmatpush1.msra.mxu0 %v268
        %585 = vmatprep.subr.mxu0 0.0
        %586 = vmatpush1.msra.mxu0 %v271
        %587 = vmatprep.subr.mxu0 0.0
        %588 = vmatpush1.msra.mxu0 %v274
        %589 = vmatprep.subr.mxu0 0.0
        %590 = vmatpush1.msra.mxu0 %v277
        %591 = vmatprep.subr.mxu0 0.0
        %592 = vmatpush1.msra.mxu0 %v280
        %593 = vmatprep.subr.mxu0 0.0
        %594 = vmatpush1.msra.mxu0 %v283
        %595 = vmatprep.subr.mxu0 0.0
        %596 = vmatpush1.msra.mxu0 %v286
        %597 = vmatprep.subr.mxu0 0.0
        %598 = vmatpush1.msra.mxu0 %v289
        %599 = vmatprep.subr.mxu0 0.0
        %600 = vmatpush1.msra.mxu0 %v292
        %601 = vmatprep.subr.mxu0 0.0
        %602 = vmatpush1.msra.mxu0 %v295
        %603 = vmatprep.subr.mxu0 0.0
        %604 = vmatpush1.msra.mxu0 %v298
        %605 = vmatprep.subr.mxu0 0.0
        %606 = vmatpush1.msra.mxu0 %v301
        %607 = vmatprep.subr.mxu0 0.0
        %608 = vmatpush1.msra.mxu0 %v304
        %609 = vmatprep.subr.mxu0 0.0
        %610 = vmatpush1.msra.mxu0 %v307
        %611 = vmatprep.subr.mxu0 0.0
        %612 = vmatpush1.msra.mxu0 %v310
        %613 = vmatprep.subr.mxu0 0.0
        %614 = vmatpush1.msra.mxu0 %v313
        %615 = vmatprep.subr.mxu0 0.0
        %616 = vmatpush1.msra.mxu0 0.0
        %617 = vmatprep.subr.mxu0 0.0
        %618 = vmatpush1.msra.mxu0 0.0
        %619 = vmatprep.subr.mxu0 0.0
        %620 = vmatpush1.msra.mxu0 0.0
        %621 = vmatprep.subr.mxu0 0.0
        %622 = vmatpush1.msra.mxu0 0.0
        %623 = vmatprep.subr.mxu0 0.0
        %624 = vmatpush1.msra.mxu0 0.0
        %625 = vmatprep.subr.mxu0 0.0
        %626 = vmatpush1.msra.mxu0 0.0
        %627 = vmatprep.subr.mxu0 0.0
        %628 = vmatpush1.msra.mxu0 0.0
        %629 = vmatprep.subr.mxu0 0.0
        %630 = vmatpush1.msra.mxu0 0.0
        %631 = vmatprep.subr.mxu0 0.0
        %632 = vmatpush1.msra.mxu0 0.0
        %633 = vmatprep.subr.mxu0 0.0
        %634 = vmatpush1.msra.mxu0 0.0
        %635 = vmatprep.subr.mxu0 0.0
        %636 = vmatpush1.msra.mxu0 0.0
        %637 = vmatprep.subr.mxu0 0.0
        %638 = vmatpush1.msra.mxu0 0.0
        %639 = vmatprep.subr.mxu0 0.0
        %640 = vmatpush1.msra.mxu0 0.0
        %641 = vmatprep.subr.mxu0 0.0
        %642 = vmatpush1.msra.mxu0 0.0
        %643 = vmatprep.subr.mxu0 0.0
        %644 = vmatpush1.msra.mxu0 0.0
        %645 = vmatprep.subr.mxu0 0.0
        %646 = vmatpush1.msra.mxu0 0.0
        %647 = vmatprep.mubr.f32.mxu0 0.0
        %648 = vmatmul.mubr.f32.gmra.mrb[0].mxu0 %v505
        %v649 = vpop.f32.mrb[0].mxu0
        %v650 = vadd.f32 %v332, %v649
        %v651 = vpop.f32.mrb[0].mxu0
        %652 = vdwg.mxu0
        %v653 = vadd.f32 %v509, %v579
        %v654 = vxor.u32 %v653, 2147483648
        %v655 = vmul.f32 %v654, 1.442695
        %v656 = vpow.pop %v655
        %v657 = vadd.f32 %v656, 1.0
        %v658 = vrcp.pop %v657
        %v659 = vmul.f32 1.0, %v658
        %v660 = vadd.f32 %v510, %v581
        %v661 = vxor.u32 %v660, 2147483648
        %v662 = vmul.f32 %v661, 1.442695
        %v663 = vpow.pop %v662
        %v664 = vadd.f32 %v663, 1.0
        %v665 = vrcp.pop %v664
        %v666 = vmul.f32 1.0, %v665
        %v667 = vmul.f32 %v659, %v650
        %v668 = vadd.f32 %v511, %v667
        %v669 = vtanh.pop %v668
        %v670 = vsub.f32 1.0, %v666
        %v671 = vmul.f32 %v670, %v669
        %v672 = vmul.f32 %v666, %v505
        %v673 = vadd.f32 %v671, %v672
        %s674 = sadd.s32 %s315, 1
        %v675 = vstv %s674
        %vm676 = vcmp.lt.s32.totalorder %v675, %v265
        %v677 = vsel %vm676, 1, 0
        %678 = vset.pattern.permute.xlu0 0
        %679 = vperm.xlu0 %678, %v677
        %v680 = vpop.permute.xlu0 %679
        %vm681 = vcmp.eq.s32.totalorder %v680, 1
        %v682 = vsel %vm681, %v673, %v505
        %v683 = vsel %vm681, %v673, 0.0
        %s684 = scalar_lea.vmem %s255, 8 [#allocation8]
        %685 = vst [vmem:[%s684] sm:$0xff] %v683
        %s686 = scalar_lea.vmem %s227, 48 [#allocation3]
        %v687 = vld [vmem:[%s686] sm:$0xff]
        %v688 = vld [vmem:[%s686 + $0x8] sm:$0xff]
        %v689 = vld [vmem:[%s686 + $0x10] sm:$0xff]
        %690 = vmatprep.subr.mxu0 %v267
        %691 = vmatpush1.msra.mxu0 %v266
        %692 = vmatprep.subr.mxu0 %v270
        %693 = vmatpush1.msra.mxu0 %v269
        %694 = vmatprep.subr.mxu0 %v273
        %695 = vmatpush1.msra.mxu0 %v272
        %696 = vmatprep.subr.mxu0 %v276
        %697 = vmatpush1.msra.mxu0 %v275
        %698 = vmatprep.subr.mxu0 %v279
        %699 = vmatpush1.msra.mxu0 %v278
        %700 = vmatprep.subr.mxu0 %v282
        %701 = vmatpush1.msra.mxu0 %v281
        %702 = vmatprep.subr.mxu0 %v285
        %703 = vmatpush1.msra.mxu0 %v284
        %704 = vmatprep.subr.mxu0 %v288
        %705 = vmatpush1.msra.mxu0 %v287
        %706 = vmatprep.subr.mxu0 %v291
        %707 = vmatpush1.msra.mxu0 %v290
        %708 = vmatprep.subr.mxu0 %v294
        %709 = vmatpush1.msra.mxu0 %v293
        %710 = vmatprep.subr.mxu0 %v297
        %711 = vmatpush1.msra.mxu0 %v296
        %712 = vmatprep.subr.mxu0 %v300
        %713 = vmatpush1.msra.mxu0 %v299
        %714 = vmatprep.subr.mxu0 %v303
        %715 = vmatpush1.msra.mxu0 %v302
        %716 = vmatprep.subr.mxu0 %v306
        %717 = vmatpush1.msra.mxu0 %v305
        %718 = vmatprep.subr.mxu0 %v309
        %719 = vmatpush1.msra.mxu0 %v308
        %720 = vmatprep.subr.mxu0 %v312
        %721 = vmatpush1.msra.mxu0 %v311
        %722 = vmatprep.subr.mxu0 0.0
        %723 = vmatpush1.msra.mxu0 0.0
        %724 = vmatprep.subr.mxu0 0.0
        %725 = vmatpush1.msra.mxu0 0.0
        %726 = vmatprep.subr.mxu0 0.0
        %727 = vmatpush1.msra.mxu0 0.0
        %728 = vmatprep.subr.mxu0 0.0
        %729 = vmatpush1.msra.mxu0 0.0
        %730 = vmatprep.subr.mxu0 0.0
        %731 = vmatpush1.msra.mxu0 0.0
        %732 = vmatprep.subr.mxu0 0.0
        %733 = vmatpush1.msra.mxu0 0.0
        %734 = vmatprep.subr.mxu0 0.0
        %735 = vmatpush1.msra.mxu0 0.0
        %736 = vmatprep.subr.mxu0 0.0
        %737 = vmatpush1.msra.mxu0 0.0
        %738 = vmatprep.subr.mxu0 0.0
        %739 = vmatpush1.msra.mxu0 0.0
        %740 = vmatprep.subr.mxu0 0.0
        %741 = vmatpush1.msra.mxu0 0.0
        %742 = vmatprep.subr.mxu0 0.0
        %743 = vmatpush1.msra.mxu0 0.0
        %744 = vmatprep.subr.mxu0 0.0
        %745 = vmatpush1.msra.mxu0 0.0
        %746 = vmatprep.subr.mxu0 0.0
        %747 = vmatpush1.msra.mxu0 0.0
        %748 = vmatprep.subr.mxu0 0.0
        %749 = vmatpush1.msra.mxu0 0.0
        %750 = vmatprep.subr.mxu0 0.0
        %751 = vmatpush1.msra.mxu0 0.0
        %752 = vmatprep.subr.mxu0 0.0
        %753 = vmatpush1.msra.mxu0 0.0
        %754 = vmatprep.mubr.f32.mxu0 0.0
        %755 = vmatmul.mubr.f32.gmra.mrb[0].mxu0 %v682
        %v756 = vpop.f32.mrb[0].mxu0
        %v757 = vadd.f32 %v324, %v756
        %v758 = vpop.f32.mrb[0].mxu0
        %v759 = vadd.f32 %v328, %v758
        %760 = vdwg.mxu0
        %761 = vmatprep.subr.mxu0 0.0
        %762 = vmatpush1.msra.mxu0 %v268
        %763 = vmatprep.subr.mxu0 0.0
        %764 = vmatpush1.msra.mxu0 %v271
        %765 = vmatprep.subr.mxu0 0.0
        %766 = vmatpush1.msra.mxu0 %v274
        %767 = vmatprep.subr.mxu0 0.0
        %768 = vmatpush1.msra.mxu0 %v277
        %769 = vmatprep.subr.mxu0 0.0
        %770 = vmatpush1.msra.mxu0 %v280
        %771 = vmatprep.subr.mxu0 0.0
        %772 = vmatpush1.msra.mxu0 %v283
        %773 = vmatprep.subr.mxu0 0.0
        %774 = vmatpush1.msra.mxu0 %v286
        %775 = vmatprep.subr.mxu0 0.0
        %776 = vmatpush1.msra.mxu0 %v289
        %777 = vmatprep.subr.mxu0 0.0
        %778 = vmatpush1.msra.mxu0 %v292
        %779 = vmatprep.subr.mxu0 0.0
        %780 = vmatpush1.msra.mxu0 %v295
        %781 = vmatprep.subr.mxu0 0.0
        %782 = vmatpush1.msra.mxu0 %v298
        %783 = vmatprep.subr.mxu0 0.0
        %784 = vmatpush1.msra.mxu0 %v301
        %785 = vmatprep.subr.mxu0 0.0
        %786 = vmatpush1.msra.mxu0 %v304
        %787 = vmatprep.subr.mxu0 0.0
        %788 = vmatpush1.msra.mxu0 %v307
        %789 = vmatprep.subr.mxu0 0.0
        %790 = vmatpush1.msra.mxu0 %v310
        %791 = vmatprep.subr.mxu0 0.0
        %792 = vmatpush1.msra.mxu0 %v313
        %793 = vmatprep.subr.mxu0 0.0
        %794 = vmatpush1.msra.mxu0 0.0
        %795 = vmatprep.subr.mxu0 0.0
        %796 = vmatpush1.msra.mxu0 0.0
        %797 = vmatprep.subr.mxu0 0.0
        %798 = vmatpush1.msra.mxu0 0.0
        %799 = vmatprep.subr.mxu0 0.0
        %800 = vmatpush1.msra.mxu0 0.0
        %801 = vmatprep.subr.mxu0 0.0
        %802 = vmatpush1.msra.mxu0 0.0
        %803 = vmatprep.subr.mxu0 0.0
        %804 = vmatpush1.msra.mxu0 0.0
        %805 = vmatprep.subr.mxu0 0.0
        %806 = vmatpush1.msra.mxu0 0.0
        %807 = vmatprep.subr.mxu0 0.0
        %808 = vmatpush1.msra.mxu0 0.0
        %809 = vmatprep.subr.mxu0 0.0
        %810 = vmatpush1.msra.mxu0 0.0
        %811 = vmatprep.subr.mxu0 0.0
        %812 = vmatpush1.msra.mxu0 0.0
        %813 = vmatprep.subr.mxu0 0.0
        %814 = vmatpush1.msra.mxu0 0.0
        %815 = vmatprep.subr.mxu0 0.0
        %816 = vmatpush1.msra.mxu0 0.0
        %817 = vmatprep.subr.mxu0 0.0
        %818 = vmatpush1.msra.mxu0 0.0
        %819 = vmatprep.subr.mxu0 0.0
        %820 = vmatpush1.msra.mxu0 0.0
        %821 = vmatprep.subr.mxu0 0.0
        %822 = vmatpush1.msra.mxu0 0.0
        %823 = vmatprep.subr.mxu0 0.0
        %824 = vmatpush1.msra.mxu0 0.0
        %825 = vmatprep.mubr.f32.mxu0 0.0
        %826 = vmatmul.mubr.f32.gmra.mrb[0].mxu0 %v682
        %v827 = vpop.f32.mrb[0].mxu0
        %v828 = vadd.f32 %v332, %v827
        %v829 = vpop.f32.mrb[0].mxu0
        %830 = vdwg.mxu0
        %v831 = vadd.f32 %v687, %v757
        %v832 = vxor.u32 %v831, 2147483648
        %v833 = vmul.f32 %v832, 1.442695
        %v834 = vpow.pop %v833
        %v835 = vadd.f32 %v834, 1.0
        %v836 = vrcp.pop %v835
        %v837 = vmul.f32 1.0, %v836
        %v838 = vadd.f32 %v688, %v759
        %v839 = vxor.u32 %v838, 2147483648
        %v840 = vmul.f32 %v839, 1.442695
        %v841 = vpow.pop %v840
        %v842 = vadd.f32 %v841, 1.0
        %v843 = vrcp.pop %v842
        %v844 = vmul.f32 1.0, %v843
        %v845 = vmul.f32 %v837, %v828
        %v846 = vadd.f32 %v689, %v845
        %v847 = vtanh.pop %v846
        %v848 = vsub.f32 1.0, %v844
        %v849 = vmul.f32 %v848, %v847
        %v850 = vmul.f32 %v844, %v682
        %v851 = vadd.f32 %v849, %v850
        %s852 = sadd.s32 %s315, 2
        %v853 = vstv %s852
        %vm854 = vcmp.lt.s32.totalorder %v853, %v265
        %v855 = vsel %vm854, 1, 0
        %856 = vset.pattern.permute.xlu0 0
        %857 = vperm.xlu0 %856, %v855
        %v858 = vpop.permute.xlu0 %857
        %vm859 = vcmp.eq.s32.totalorder %v858, 1
        %v860 = vsel %vm859, %v851, %v682
        %v861 = vsel %vm859, %v851, 0.0
        %s862 = scalar_lea.vmem %s255, 16 [#allocation8]
        %863 = vst [vmem:[%s862] sm:$0xff] %v861
        %s864 = scalar_lea.vmem %s227, 72 [#allocation3]
        %v865 = vld [vmem:[%s864] sm:$0xff]
        %v866 = vld [vmem:[%s864 + $0x8] sm:$0xff]
        %v867 = vld [vmem:[%s864 + $0x10] sm:$0xff]
        %868 = vmatprep.subr.mxu0 %v267
        %869 = vmatpush1.msra.mxu0 %v266
        %870 = vmatprep.subr.mxu0 %v270
        %871 = vmatpush1.msra.mxu0 %v269
        %872 = vmatprep.subr.mxu0 %v273
        %873 = vmatpush1.msra.mxu0 %v272
        %874 = vmatprep.subr.mxu0 %v276
        %875 = vmatpush1.msra.mxu0 %v275
        %876 = vmatprep.subr.mxu0 %v279
        %877 = vmatpush1.msra.mxu0 %v278
        %878 = vmatprep.subr.mxu0 %v282
        %879 = vmatpush1.msra.mxu0 %v281
        %880 = vmatprep.subr.mxu0 %v285
        %881 = vmatpush1.msra.mxu0 %v284
        %882 = vmatprep.subr.mxu0 %v288
        %883 = vmatpush1.msra.mxu0 %v287
        %884 = vmatprep.subr.mxu0 %v291
        %885 = vmatpush1.msra.mxu0 %v290
        %886 = vmatprep.subr.mxu0 %v294
        %887 = vmatpush1.msra.mxu0 %v293
        %888 = vmatprep.subr.mxu0 %v297
        %889 = vmatpush1.msra.mxu0 %v296
        %890 = vmatprep.subr.mxu0 %v300
        %891 = vmatpush1.msra.mxu0 %v299
        %892 = vmatprep.subr.mxu0 %v303
        %893 = vmatpush1.msra.mxu0 %v302
        %894 = vmatprep.subr.mxu0 %v306
        %895 = vmatpush1.msra.mxu0 %v305
        %896 = vmatprep.subr.mxu0 %v309
        %897 = vmatpush1.msra.mxu0 %v308
        %898 = vmatprep.subr.mxu0 %v312
        %899 = vmatpush1.msra.mxu0 %v311
        %900 = vmatprep.subr.mxu0 0.0
        %901 = vmatpush1.msra.mxu0 0.0
        %902 = vmatprep.subr.mxu0 0.0
        %903 = vmatpush1.msra.mxu0 0.0
        %904 = vmatprep.subr.mxu0 0.0
        %905 = vmatpush1.msra.mxu0 0.0
        %906 = vmatprep.subr.mxu0 0.0
        %907 = vmatpush1.msra.mxu0 0.0
        %908 = vmatprep.subr.mxu0 0.0
        %909 = vmatpush1.msra.mxu0 0.0
        %910 = vmatprep.subr.mxu0 0.0
        %911 = vmatpush1.msra.mxu0 0.0
        %912 = vmatprep.subr.mxu0 0.0
        %913 = vmatpush1.msra.mxu0 0.0
        %914 = vmatprep.subr.mxu0 0.0
        %915 = vmatpush1.msra.mxu0 0.0
        %916 = vmatprep.subr.mxu0 0.0
        %917 = vmatpush1.msra.mxu0 0.0
        %918 = vmatprep.subr.mxu0 0.0
        %919 = vmatpush1.msra.mxu0 0.0
        %920 = vmatprep.subr.mxu0 0.0
        %921 = vmatpush1.msra.mxu0 0.0
        %922 = vmatprep.subr.mxu0 0.0
        %923 = vmatpush1.msra.mxu0 0.0
        %924 = vmatprep.subr.mxu0 0.0
        %925 = vmatpush1.msra.mxu0 0.0
        %926 = vmatprep.subr.mxu0 0.0
        %927 = vmatpush1.msra.mxu0 0.0
        %928 = vmatprep.subr.mxu0 0.0
        %929 = vmatpush1.msra.mxu0 0.0
        %930 = vmatprep.subr.mxu0 0.0
        %931 = vmatpush1.msra.mxu0 0.0
        %932 = vmatprep.mubr.f32.mxu0 0.0
        %933 = vmatmul.mubr.f32.gmra.mrb[0].mxu0 %v860
        %v934 = vpop.f32.mrb[0].mxu0
        %v935 = vadd.f32 %v324, %v934
        %v936 = vpop.f32.mrb[0].mxu0
        %v937 = vadd.f32 %v328, %v936
        %938 = vdwg.mxu0
        %939 = vmatprep.subr.mxu0 0.0
        %940 = vmatpush1.msra.mxu0 %v268
        %941 = vmatprep.subr.mxu0 0.0
        %942 = vmatpush1.msra.mxu0 %v271
        %943 = vmatprep.subr.mxu0 0.0
        %944 = vmatpush1.msra.mxu0 %v274
        %945 = vmatprep.subr.mxu0 0.0
        %946 = vmatpush1.msra.mxu0 %v277
        %947 = vmatprep.subr.mxu0 0.0
        %948 = vmatpush1.msra.mxu0 %v280
        %949 = vmatprep.subr.mxu0 0.0
        %950 = vmatpush1.msra.mxu0 %v283
        %951 = vmatprep.subr.mxu0 0.0
        %952 = vmatpush1.msra.mxu0 %v286
        %953 = vmatprep.subr.mxu0 0.0
        %954 = vmatpush1.msra.mxu0 %v289
        %955 = vmatprep.subr.mxu0 0.0
        %956 = vmatpush1.msra.mxu0 %v292
        %957 = vmatprep.subr.mxu0 0.0
        %958 = vmatpush1.msra.mxu0 %v295
        %959 = vmatprep.subr.mxu0 0.0
        %960 = vmatpush1.msra.mxu0 %v298
        %961 = vmatprep.subr.mxu0 0.0
        %962 = vmatpush1.msra.mxu0 %v301
        %963 = vmatprep.subr.mxu0 0.0
        %964 = vmatpush1.msra.mxu0 %v304
        %965 = vmatprep.subr.mxu0 0.0
        %966 = vmatpush1.msra.mxu0 %v307
        %967 = vmatprep.subr.mxu0 0.0
        %968 = vmatpush1.msra.mxu0 %v310
        %969 = vmatprep.subr.mxu0 0.0
        %970 = vmatpush1.msra.mxu0 %v313
        %971 = vmatprep.subr.mxu0 0.0
        %972 = vmatpush1.msra.mxu0 0.0
        %973 = vmatprep.subr.mxu0 0.0
        %974 = vmatpush1.msra.mxu0 0.0
        %975 = vmatprep.subr.mxu0 0.0
        %976 = vmatpush1.msra.mxu0 0.0
        %977 = vmatprep.subr.mxu0 0.0
        %978 = vmatpush1.msra.mxu0 0.0
        %979 = vmatprep.subr.mxu0 0.0
        %980 = vmatpush1.msra.mxu0 0.0
        %981 = vmatprep.subr.mxu0 0.0
        %982 = vmatpush1.msra.mxu0 0.0
        %983 = vmatprep.subr.mxu0 0.0
        %984 = vmatpush1.msra.mxu0 0.0
        %985 = vmatprep.subr.mxu0 0.0
        %986 = vmatpush1.msra.mxu0 0.0
        %987 = vmatprep.subr.mxu0 0.0
        %988 = vmatpush1.msra.mxu0 0.0
        %989 = vmatprep.subr.mxu0 0.0
        %990 = vmatpush1.msra.mxu0 0.0
        %991 = vmatprep.subr.mxu0 0.0
        %992 = vmatpush1.msra.mxu0 0.0
        %993 = vmatprep.subr.mxu0 0.0
        %994 = vmatpush1.msra.mxu0 0.0
        %995 = vmatprep.subr.mxu0 0.0
        %996 = vmatpush1.msra.mxu0 0.0
        %997 = vmatprep.subr.mxu0 0.0
        %998 = vmatpush1.msra.mxu0 0.0
        %999 = vmatprep.subr.mxu0 0.0
        %1000 = vmatpush1.msra.mxu0 0.0
        %1001 = vmatprep.subr.mxu0 0.0
        %1002 = vmatpush1.msra.mxu0 0.0
        %1003 = vmatprep.mubr.f32.mxu0 0.0
        %1004 = vmatmul.mubr.f32.gmra.mrb[0].mxu0 %v860
        %v1005 = vpop.f32.mrb[0].mxu0
        %v1006 = vadd.f32 %v332, %v1005
        %v1007 = vpop.f32.mrb[0].mxu0
        %1008 = vdwg.mxu0
        %v1009 = vadd.f32 %v865, %v935
        %v1010 = vxor.u32 %v1009, 2147483648
        %v1011 = vmul.f32 %v1010, 1.442695
        %v1012 = vpow.pop %v1011
        %v1013 = vadd.f32 %v1012, 1.0
        %v1014 = vrcp.pop %v1013
        %v1015 = vmul.f32 1.0, %v1014
        %v1016 = vadd.f32 %v866, %v937
        %v1017 = vxor.u32 %v1016, 2147483648
        %v1018 = vmul.f32 %v1017, 1.442695
        %v1019 = vpow.pop %v1018
        %v1020 = vadd.f32 %v1019, 1.0
        %v1021 = vrcp.pop %v1020
        %v1022 = vmul.f32 1.0, %v1021
        %v1023 = vmul.f32 %v1015, %v1006
        %v1024 = vadd.f32 %v867, %v1023
        %v1025 = vtanh.pop %v1024
        %v1026 = vsub.f32 1.0, %v1022
        %v1027 = vmul.f32 %v1026, %v1025
        %v1028 = vmul.f32 %v1022, %v860
        %v1029 = vadd.f32 %v1027, %v1028
        %s1030 = sadd.s32 %s315, 3
        %v1031 = vstv %s1030
        %vm1032 = vcmp.lt.s32.totalorder %v1031, %v265
        %v1033 = vsel %vm1032, 1, 0
        %1034 = vset.pattern.permute.xlu0 0
        %1035 = vperm.xlu0 %1034, %v1033
        %v1036 = vpop.permute.xlu0 %1035
        %vm1037 = vcmp.eq.s32.totalorder %v1036, 1
        %v1038 = vsel %vm1037, %v1029, %v860
        %v1039 = vsel %vm1037, %v1029, 0.0
        %s1040 = scalar_lea.vmem %s255, 24 [#allocation8]
        %1041 = vst [vmem:[%s1040] sm:$0xff] %v1039
        %1042 = vst [vmem:[#allocation2] sm:$0xff] %v1038
        %p1043 = scmp.eq.s32.totalorder %s25, 1
        // Predicated region
        $region49: #{tpu_custom_call.1} parent=35 // pred_check
          %p1044 = pneg %p1043
        $region50: #{tpu_custom_call.1} parent=35 // pred_check_branch
          %1046 = sbr.rel (%p1044) target = $region52
        $region51: #{tpu_custom_call.1} parent=35 // pred_region
          %v1047 = vld [vmem:[#allocation2] sm:$0xff]
          %1048 = vst [vmem:[#allocation9] sm:$0xff] %v1047
        $region52: #{tpu_custom_call.1} parent=35 // pred_fallthru
          _
        %s1049 = sand.u32 %s122, 1
        %s1050 = scalar_lea.sflag [#allocation5], %s1049
        %s1051 = sand.u32 %s122, 1
        %s1052 = smul.addr %s1051, 32
        %s1053 = scalar_lea.vmem [#allocation8], %s1052
        // Predicated region
        $region53: #{tpu_custom_call.1} parent=35 // pred_check
          %p1054 = pneg %p132
        $region54: #{tpu_custom_call.1} parent=35 // pred_check_branch
          %1056 = sbr.rel (%p1054) target = $region56
        $region55: #{tpu_custom_call.1} parent=35 // pred_region
          %s1057 = smul.u32 4, %s25
          %s1059 = ssub.s32 512, 512
          %1060 = vsyncadd %s1050, %s1059
          %s1061 = smul.addr %s1057, 128
          %s1062 = scalar_lea.hbm %s4, %s1061
          %s1063 = sshll.u32 %s1053, 4
          %s1064 = int_to_ptr.vmem [resolvable:$true] %s1063
          %1069 = dma.vmem_to_hbm [thread:$0]  %s1064, 512, %s1062, %s1050, 128, 128, 8
        $region56: #{tpu_custom_call.1} parent=35 // pred_fallthru
          _
        // Predicated region
        $region57: #{tpu_custom_call.1} parent=35 // pred_check
          %p1070 = pneg %p153
        $region58: #{tpu_custom_call.1} parent=35 // pred_check_branch
          %1072 = sbr.rel (%p1070) target = $region60
        $region59: #{tpu_custom_call.1} parent=35 // pred_region
          %s1074 = ssub.s32 128, 128
          %1075 = vsyncadd [#allocation10], %s1074
          %s1077 = sshll.u32 [#allocation9], 4
          %s1078 = int_to_ptr.vmem [resolvable:$true] %s1077
          %1080 = dma.vmem_to_hbm [thread:$0]  %s1078, 128, %s5, [#allocation10]
        $region60: #{tpu_custom_call.1} parent=35 // pred_fallthru
          _
        // Predicated region
        $region61: #{tpu_custom_call.1} parent=35 // pred_check
          %p1081 = pneg %p153
        $region62: #{tpu_custom_call.1} parent=35 // pred_check_branch
          %1083 = sbr.rel (%p1081) target = $region64
        $region63: #{tpu_custom_call.1} parent=35 // pred_region
          %1084 = dma.done [#allocation10], 128
        $region64: #{tpu_custom_call.1} parent=35 // pred_fallthru
          _
      $region36: #{tpu_custom_call.1} parent=5 // pred_fallthru
        _
      %p1085 = scmp.le.s32.totalorder 2, %s20
      // Predicated region
      $region65: #{tpu_custom_call.1} parent=5 // pred_check
        %p1086 = pneg %p1085
      $region66: #{tpu_custom_call.1} parent=5 // pred_check_branch
        %1088 = sbr.rel (%p1086) target = $region68
      $region67: #{tpu_custom_call.1} parent=5 // pred_region
        %s1089 = ssub.s32 %s20, 2
        // Predicated region
        $region69: #{tpu_custom_call.1} parent=67 // pred_check
          %p1090 = pneg %p138
        $region70: #{tpu_custom_call.1} parent=67 // pred_check_branch
          %1092 = sbr.rel (%p1090) target = $region72
        $region71: #{tpu_custom_call.1} parent=67 // pred_region
          %s1093 = sand.u32 %s123, 1
          %s1094 = scalar_lea.sflag [#allocation5], %s1093
          %s1095 = sand.u32 %s123, 1
          %s1096 = smul.addr %s1095, 32
          %s1097 = scalar_lea.vmem [#allocation8], %s1096
          %1098 = dma.done %s1094, 512
        $region72: #{tpu_custom_call.1} parent=67 // pred_fallthru
          _
      $region68: #{tpu_custom_call.1} parent=5 // pred_fallthru
        _
    $region6: #{tpu_custom_call.1} parent=1 // loop_footer
      %s24 = sadd.s32 1, %s20
    $region7: #{tpu_custom_call.1} parent=1 // loop_footer_branch
      %19 = sbr.rel target = $region3
    $region8: #{tpu_custom_call.1} parent=1 // loop_exit
      _
    %1099 = vsyncpa [#allocation4], 1
    %s1100 = scalar_lea.sflag [#allocation4], 1
    %1101 = vsyncpa %s1100, 1
    %1102 = vsyncpa [#allocation7], 1
    %1103 = vsyncpa [#allocation5], 1
    %s1104 = scalar_lea.sflag [#allocation5], 1
    %1105 = vsyncpa %s1104, 1
    %1106 = vsyncpa [#allocation10], 1

</llo_original>
